<compile_context>
chip_gen: v5e
topology: v5e:2x2
jax: 0.10.0
libtpu: 0.0.40
codegen_flags: <defaults>
</compile_context>

<pallas_src>
import functools
import math

import jax
import jax.numpy as jnp
from jax.experimental import pallas as pl
from jax.experimental.pallas import tpu as pltpu


def _pointnet_kernel(x_ref,
                     w1_ref, b1_ref,
                     w2_ref, b2_ref,
                     w3_ref, b3_ref,
                     w4_ref, b4_ref,
                     w5_ref, b5_ref,
                     o_ref,
                     *, emb_chunk, n_chunks):
    # x_ref : (1, 3, TILE_N) f32
    # w1    : (64, 3) f32,  b1: (64, 1) f32
    # w2..w5: (C_out, C_in) bf16,  b2..b5: (C_out, 1) bf16
    # o_ref : (1, emb, TILE_N) bf16 (or requested out dtype)
    x = x_ref[0]                      # (3, TILE_N) f32
    w1 = w1_ref[...]                  # (64, 3)    f32

    # Layer 1 (C_in = 3): 3 broadcast FMAs on the VPU (an MXU matmul would be
    # nearly empty).  Epilogue in f32, then cast once to bf16 for the MXU.
    h = (w1[:, 0:1] * x[0:1, :]
         + w1[:, 1:2] * x[1:2, :]
         + w1[:, 2:3] * x[2:3, :]
         + b1_ref[...])
    h = jnp.maximum(h, 0.0).astype(jnp.bfloat16)      # (64, TILE_N) bf16

    def layer(h_bf16, w_ref, b_ref):
        # bf16 MXU matmul with f32 accumulate; bias + ReLU epilogue in bf16
        # (packed VALU on v6e/v7x; lowered via f32 on v5e — still correct).
        acc = jnp.dot(w_ref[...], h_bf16, preferred_element_type=jnp.float32)
        return jnp.maximum(acc.astype(jnp.bfloat16) + b_ref[...], 0)

    h = layer(h, w2_ref, b2_ref)      # (64,  TILE_N) bf16
    h = layer(h, w3_ref, b3_ref)      # (64,  TILE_N) bf16
    h = layer(h, w4_ref, b4_ref)      # (128, TILE_N) bf16

    # Layer 5: chunk over emb (128 rows / MXU pass) and store each chunk
    # straight into o_ref — no (emb, TILE_N) intermediate, no extra vst pass.
    for c in range(n_chunks):
        row = c * emb_chunk
        w5c = w5_ref[pl.ds(row, emb_chunk), :]        # (emb_chunk, 128) bf16
        b5c = b5_ref[pl.ds(row, emb_chunk), :]        # (emb_chunk, 1)   bf16
        acc = jnp.dot(w5c, h, preferred_element_type=jnp.float32)
        o_ref[0, pl.ds(row, emb_chunk), :] = jnp.maximum(
            acc.astype(jnp.bfloat16) + b5c, 0).astype(o_ref.dtype)


def pointnet_forward(x, params, *, tile_n=2048, out_dtype=jnp.bfloat16):
    """x: (B, 3, N) float32 -> (B, emb_dims, N) `out_dtype` (PyTorch NCL layout).

    Output is bf16 by default (the kernel is writeback-bound; accumulation is
    still f32 inside).  Pass out_dtype=jnp.float32 if the consumer needs f32.
    """
    B, C_in, N = x.shape
    assert C_in == 3
    emb = params["w5"].shape[0]

    # Point tile: a multiple of 128, no larger than needed, default 2048
    # (safe on v7x's 64 MiB VMEM; sweep 2048/4096 on v5e/v6e if desired).
    tile = min(tile_n, ((N + 127) // 128) * 128)
    tile = max(128, (tile // 128) * 128)
    n_tiles = pl.cdiv(N, tile)

    # Only the INPUT is padded (12 B/point — cheap).  The output keeps its true
    # length N; the last output block is boundary-clipped on writeback, so
    # there is no post-call slice copy of the dominant output stream.
    N_pad = n_tiles * tile
    if N_pad != N:
        x = jnp.pad(x, ((0, 0), (0, 0), (0, N_pad - N)))

    # Grid-invariant operands: f32 for the VPU layer-1 path, bf16 for the MXU
    # layers and their bf16 epilogues.
    w1, b1 = params["w1"], params["b1"]
    w2 = params["w2"].astype(jnp.bfloat16)
    w3 = params["w3"].astype(jnp.bfloat16)
    w4 = params["w4"].astype(jnp.bfloat16)
    w5 = params["w5"].astype(jnp.bfloat16)
    b2 = params["b2"].astype(jnp.bfloat16)
    b3 = params["b3"].astype(jnp.bfloat16)
    b4 = params["b4"].astype(jnp.bfloat16)
    b5 = params["b5"].astype(jnp.bfloat16)

    emb_chunk = 128 if emb % 128 == 0 else emb
    n_chunks = emb // emb_chunk

    kernel = functools.partial(
        _pointnet_kernel, emb_chunk=emb_chunk, n_chunks=n_chunks)

    def full_spec(shape):
        # Whole (tiny) weight/bias array resident at every grid step.
        return pl.BlockSpec(shape, lambda b, n: (0,) * len(shape))

    in_specs = [
        pl.BlockSpec((1, 3, tile), lambda b, n: (b, 0, n)),
        full_spec(w1.shape), full_spec(b1.shape),
        full_spec(w2.shape), full_spec(b2.shape),
        full_spec(w3.shape), full_spec(b3.shape),
        full_spec(w4.shape), full_spec(b4.shape),
        full_spec(w5.shape), full_spec(b5.shape),
    ]
    out_spec = pl.BlockSpec((1, emb, tile), lambda b, n: (b, 0, n))

    return pl.pallas_call(
        kernel,
        out_shape=jax.ShapeDtypeStruct((B, emb, N), out_dtype),
        grid_spec=pltpu.PrefetchScalarGridSpec(
            num_scalar_prefetch=0,
            grid=(B, n_tiles),
            in_specs=in_specs,
            out_specs=out_spec,
        ),
        compiler_params=pltpu.CompilerParams(
            dimension_semantics=("parallel", "parallel"),
            vmem_limit_bytes=32 * 1024 * 1024,   # safe on all of v5e/v6e/v7x
        ),
    )(x, w1, b1, w2, b2, w3, b3, w4, b4, w5, b5)


def init_params(key, emb_dims=512):
    """Deterministic init matching PyTorch Conv1d defaults.
    Conv1d(k=1) weight (C_out, C_in, 1) is stored as (C_out, C_in); bias as
    (C_out, 1) so it broadcasts across the lane (points) axis."""
    dims = [(3, 64), (64, 64), (64, 64), (64, 128), (128, emb_dims)]
    params = {}
    for idx, (cin, cout) in enumerate(dims, start=1):
        key, kw, kb = jax.random.split(key, 3)
        bound = 1.0 / math.sqrt(cin)
        params[f"w{idx}"] = jax.random.uniform(
            kw, (cout, cin), jnp.float32, minval=-bound, maxval=bound)
        params[f"b{idx}"] = jax.random.uniform(
            kb, (cout, 1), jnp.float32, minval=-bound, maxval=bound)
    return params


def pointnet_reference(x, params, out_dtype=jnp.bfloat16):
    """Pure-JAX reference mirroring the kernel's numerics: layer 1 in f32 on
    the VPU path, layers 2-5 as bf16 dots with f32 accumulate and bf16
    bias+ReLU epilogues, bf16 output."""
    h = jnp.maximum(
        jnp.einsum("oc,bcn->bon", params["w1"], x) + params["b1"][None], 0.0
    ).astype(jnp.bfloat16)
    for i in range(2, 6):
        w = params[f"w{i}"].astype(jnp.bfloat16)
        b = params[f"b{i}"].astype(jnp.bfloat16)
        acc = jnp.einsum("oc,bcn->bon", w, h,
                         preferred_element_type=jnp.float32)
        h = jnp.maximum(acc.astype(jnp.bfloat16) + b[None], 0)
    return h.astype(out_dtype)


if __name__ == "__main__":
    key = jax.random.PRNGKey(0)
    key, kx = jax.random.split(key)

    # Small shapes; N=200 deliberately not a multiple of 128 to exercise the
    # boundary-clipped (ragged) output path.
    B, N, emb_dims = 2, 200, 128
    x = jax.random.normal(kx, (B, 3, N), dtype=jnp.float32)
    params = init_params(key, emb_dims=emb_dims)

    out = pointnet_forward(x, params)
    out = jax.block_until_ready(out)

    ref = pointnet_reference(x, params)
    assert out.shape == (B, emb_dims, N), out.shape
    assert out.dtype == jnp.bfloat16, out.dtype
    diff = jnp.abs(out.astype(jnp.float32) - ref.astype(jnp.float32))
    tol = 5e-2 + 5e-2 * jnp.abs(ref.astype(jnp.float32))
    assert bool(jnp.all(diff <= tol)), float(jnp.max(diff))

    print("KERNEL_OK")
</pallas_src>

<mosaic_0001>
module attributes {stable_mosaic.version = 11 : i64} {
  func.func @_pointnet_kernel(%arg0: i32, %arg1: i32, %arg2: memref<1x3x256xf32, #tpu.memory_space<vmem>>, %arg3: memref<64x3xf32, #tpu.memory_space<vmem>>, %arg4: memref<64x1xf32, #tpu.memory_space<vmem>>, %arg5: memref<64x64xbf16, #tpu.memory_space<vmem>>, %arg6: memref<64x1xbf16, #tpu.memory_space<vmem>>, %arg7: memref<64x64xbf16, #tpu.memory_space<vmem>>, %arg8: memref<64x1xbf16, #tpu.memory_space<vmem>>, %arg9: memref<128x64xbf16, #tpu.memory_space<vmem>>, %arg10: memref<128x1xbf16, #tpu.memory_space<vmem>>, %arg11: memref<128x128xbf16, #tpu.memory_space<vmem>>, %arg12: memref<128x1xbf16, #tpu.memory_space<vmem>>, %arg13: memref<1x128x256xbf16, #tpu.memory_space<vmem>>) attributes {dimension_semantics = [#tpu.dimension_semantics<parallel>, #tpu.dimension_semantics<parallel>], iteration_bounds = array<i64: 2, 1>, scalar_prefetch = 0 : i64, scratch_operands = 0 : i64, tpu.core_type = #tpu.core_type<tc>, window_params = [{transform_indices = @transform_0, window_bounds = array<i64: 1, 3, 256>}, {pipeline_mode = #tpu.pipeline_mode<synchronous>, transform_indices = @transform_1, window_bounds = array<i64: 64, 3>}, {pipeline_mode = #tpu.pipeline_mode<synchronous>, transform_indices = @transform_2, window_bounds = array<i64: 64, 1>}, {pipeline_mode = #tpu.pipeline_mode<synchronous>, transform_indices = @transform_3, window_bounds = array<i64: 64, 64>}, {pipeline_mode = #tpu.pipeline_mode<synchronous>, transform_indices = @transform_4, window_bounds = array<i64: 64, 1>}, {pipeline_mode = #tpu.pipeline_mode<synchronous>, transform_indices = @transform_5, window_bounds = array<i64: 64, 64>}, {pipeline_mode = #tpu.pipeline_mode<synchronous>, transform_indices = @transform_6, window_bounds = array<i64: 64, 1>}, {pipeline_mode = #tpu.pipeline_mode<synchronous>, transform_indices = @transform_7, window_bounds = array<i64: 128, 64>}, {pipeline_mode = #tpu.pipeline_mode<synchronous>, transform_indices = @transform_8, window_bounds = array<i64: 128, 1>}, {pipeline_mode = #tpu.pipeline_mode<synchronous>, transform_indices = @transform_9, window_bounds = array<i64: 128, 128>}, {pipeline_mode = #tpu.pipeline_mode<synchronous>, transform_indices = @transform_10, window_bounds = array<i64: 128, 1>}, {transform_indices = @transform_11, window_bounds = array<i64: 1, 128, 256>}]} {
    %c0 = arith.constant 0 : index
    %c0_0 = arith.constant 0 : index
    %c0_1 = arith.constant 0 : index
    %0 = vector.load %arg2[%c0, %c0_0, %c0_1] : memref<1x3x256xf32, #tpu.memory_space<vmem>>, vector<1x3x256xf32>
    %1 = vector.shape_cast %0 : vector<1x3x256xf32> to vector<3x256xf32>
    %c0_2 = arith.constant 0 : index
    %c0_3 = arith.constant 0 : index
    %2 = vector.load %arg3[%c0_2, %c0_3] : memref<64x3xf32, #tpu.memory_space<vmem>>, vector<64x3xf32>
    %3 = vector.extract_strided_slice %2 {offsets = [0, 0], sizes = [64, 1], strides = [1, 1]} : vector<64x3xf32> to vector<64x1xf32>
    %4 = vector.extract_strided_slice %1 {offsets = [0, 0], sizes = [1, 256], strides = [1, 1]} : vector<3x256xf32> to vector<1x256xf32>
    %5 = vector.broadcast %3 : vector<64x1xf32> to vector<64x256xf32>
    %6 = vector.broadcast %4 : vector<1x256xf32> to vector<64x256xf32>
    %7 = arith.mulf %5, %6 : vector<64x256xf32>
    %8 = vector.extract_strided_slice %2 {offsets = [0, 1], sizes = [64, 1], strides = [1, 1]} : vector<64x3xf32> to vector<64x1xf32>
    %9 = vector.extract_strided_slice %1 {offsets = [1, 0], sizes = [1, 256], strides = [1, 1]} : vector<3x256xf32> to vector<1x256xf32>
    %10 = vector.broadcast %8 : vector<64x1xf32> to vector<64x256xf32>
    %11 = vector.broadcast %9 : vector<1x256xf32> to vector<64x256xf32>
    %12 = arith.mulf %10, %11 : vector<64x256xf32>
    %13 = arith.addf %7, %12 : vector<64x256xf32>
    %14 = vector.extract_strided_slice %2 {offsets = [0, 2], sizes = [64, 1], strides = [1, 1]} : vector<64x3xf32> to vector<64x1xf32>
    %15 = vector.extract_strided_slice %1 {offsets = [2, 0], sizes = [1, 256], strides = [1, 1]} : vector<3x256xf32> to vector<1x256xf32>
    %16 = vector.broadcast %14 : vector<64x1xf32> to vector<64x256xf32>
    %17 = vector.broadcast %15 : vector<1x256xf32> to vector<64x256xf32>
    %18 = arith.mulf %16, %17 : vector<64x256xf32>
    %19 = arith.addf %13, %18 : vector<64x256xf32>
    %c0_4 = arith.constant 0 : index
    %c0_5 = arith.constant 0 : index
    %20 = vector.load %arg4[%c0_4, %c0_5] : memref<64x1xf32, #tpu.memory_space<vmem>>, vector<64x1xf32>
    %21 = vector.broadcast %20 : vector<64x1xf32> to vector<64x256xf32>
    %22 = arith.addf %19, %21 : vector<64x256xf32>
    %cst = arith.constant 0.000000e+00 : f32
    %23 = vector.broadcast %cst : f32 to vector<64x256xf32>
    %24 = arith.maximumf %22, %23 : vector<64x256xf32>
    %25 = arith.truncf %24 : vector<64x256xf32> to vector<64x256xbf16>
    %c0_6 = arith.constant 0 : index
    %c0_7 = arith.constant 0 : index
    %26 = vector.load %arg5[%c0_6, %c0_7] : memref<64x64xbf16, #tpu.memory_space<vmem>>, vector<64x64xbf16>
    %cst_8 = arith.constant dense<0.000000e+00> : vector<64x256xf32>
    %27 = tpu.matmul %26, %25, %cst_8 {dimension_numbers = #tpu.dot_dimension_numbers<[1], [0], [0], [1], [0, 0, 1, 1], [], []>} : vector<64x64xbf16>, vector<64x256xbf16>, vector<64x256xf32> -> vector<64x256xf32>
    %28 = arith.truncf %27 : vector<64x256xf32> to vector<64x256xbf16>
    %c0_9 = arith.constant 0 : index
    %c0_10 = arith.constant 0 : index
    %29 = vector.load %arg6[%c0_9, %c0_10] : memref<64x1xbf16, #tpu.memory_space<vmem>>, vector<64x1xbf16>
    %30 = vector.broadcast %29 : vector<64x1xbf16> to vector<64x256xbf16>
    %31 = arith.addf %28, %30 : vector<64x256xbf16>
    %cst_11 = arith.constant 0.000000e+00 : bf16
    %32 = vector.broadcast %cst_11 : bf16 to vector<64x256xbf16>
    %33 = arith.maximumf %31, %32 : vector<64x256xbf16>
    %c0_12 = arith.constant 0 : index
    %c0_13 = arith.constant 0 : index
    %34 = vector.load %arg7[%c0_12, %c0_13] : memref<64x64xbf16, #tpu.memory_space<vmem>>, vector<64x64xbf16>
    %cst_14 = arith.constant dense<0.000000e+00> : vector<64x256xf32>
    %35 = tpu.matmul %34, %33, %cst_14 {dimension_numbers = #tpu.dot_dimension_numbers<[1], [0], [0], [1], [0, 0, 1, 1], [], []>} : vector<64x64xbf16>, vector<64x256xbf16>, vector<64x256xf32> -> vector<64x256xf32>
    %36 = arith.truncf %35 : vector<64x256xf32> to vector<64x256xbf16>
    %c0_15 = arith.constant 0 : index
    %c0_16 = arith.constant 0 : index
    %37 = vector.load %arg8[%c0_15, %c0_16] : memref<64x1xbf16, #tpu.memory_space<vmem>>, vector<64x1xbf16>
    %38 = vector.broadcast %37 : vector<64x1xbf16> to vector<64x256xbf16>
    %39 = arith.addf %36, %38 : vector<64x256xbf16>
    %cst_17 = arith.constant 0.000000e+00 : bf16
    %40 = vector.broadcast %cst_17 : bf16 to vector<64x256xbf16>
    %41 = arith.maximumf %39, %40 : vector<64x256xbf16>
    %c0_18 = arith.constant 0 : index
    %c0_19 = arith.constant 0 : index
    %42 = vector.load %arg9[%c0_18, %c0_19] : memref<128x64xbf16, #tpu.memory_space<vmem>>, vector<128x64xbf16>
    %cst_20 = arith.constant dense<0.000000e+00> : vector<128x256xf32>
    %43 = tpu.matmul %42, %41, %cst_20 {dimension_numbers = #tpu.dot_dimension_numbers<[1], [0], [0], [1], [0, 0, 1, 1], [], []>} : vector<128x64xbf16>, vector<64x256xbf16>, vector<128x256xf32> -> vector<128x256xf32>
    %44 = arith.truncf %43 : vector<128x256xf32> to vector<128x256xbf16>
    %c0_21 = arith.constant 0 : index
    %c0_22 = arith.constant 0 : index
    %45 = vector.load %arg10[%c0_21, %c0_22] : memref<128x1xbf16, #tpu.memory_space<vmem>>, vector<128x1xbf16>
    %46 = vector.broadcast %45 : vector<128x1xbf16> to vector<128x256xbf16>
    %47 = arith.addf %44, %46 : vector<128x256xbf16>
    %cst_23 = arith.constant 0.000000e+00 : bf16
    %48 = vector.broadcast %cst_23 : bf16 to vector<128x256xbf16>
    %49 = arith.maximumf %47, %48 : vector<128x256xbf16>
    %c0_24 = arith.constant 0 : index
    %c0_25 = arith.constant 0 : index
    %50 = vector.load %arg11[%c0_24, %c0_25] : memref<128x128xbf16, #tpu.memory_space<vmem>>, vector<128x128xbf16>
    %c0_26 = arith.constant 0 : index
    %c0_27 = arith.constant 0 : index
    %51 = vector.load %arg12[%c0_26, %c0_27] : memref<128x1xbf16, #tpu.memory_space<vmem>>, vector<128x1xbf16>
    %cst_28 = arith.constant dense<0.000000e+00> : vector<128x256xf32>
    %52 = tpu.matmul %50, %49, %cst_28 {dimension_numbers = #tpu.dot_dimension_numbers<[1], [0], [0], [1], [0, 0, 1, 1], [], []>} : vector<128x128xbf16>, vector<128x256xbf16>, vector<128x256xf32> -> vector<128x256xf32>
    %53 = arith.truncf %52 : vector<128x256xf32> to vector<128x256xbf16>
    %54 = vector.broadcast %51 : vector<128x1xbf16> to vector<128x256xbf16>
    %55 = arith.addf %53, %54 : vector<128x256xbf16>
    %cst_29 = arith.constant 0.000000e+00 : bf16
    %56 = vector.broadcast %cst_29 : bf16 to vector<128x256xbf16>
    %57 = arith.maximumf %55, %56 : vector<128x256xbf16>
    %c0_30 = arith.constant 0 : index
    %c0_31 = arith.constant 0 : index
    %c0_32 = arith.constant 0 : index
    %58 = vector.load %arg13[%c0_30, %c0_31, %c0_32] : memref<1x128x256xbf16, #tpu.memory_space<vmem>>, vector<1x128x256xbf16>
    %59 = vector.shape_cast %58 : vector<1x128x256xbf16> to vector<128x256xbf16>
    %60 = vector.shape_cast %57 : vector<128x256xbf16> to vector<1x128x256xbf16>
    tpu.vector_store %arg13[%c0_30, %c0_31, %c0_32], %60 {strides = array<i32>} : memref<1x128x256xbf16, #tpu.memory_space<vmem>>, vector<1x128x256xbf16>,
    return
  }
  func.func @transform_0(%arg0: i32, %arg1: i32) -> (i32, i32, i32) {
    %c0_i32 = arith.constant 0 : i32
    %c0_i32_0 = arith.constant 0 : i32
    return %arg0, %c0_i32, %arg1 : i32, i32, i32
  }
  func.func @transform_1(%arg0: i32, %arg1: i32) -> (i32, i32) {
    %c0_i32 = arith.constant 0 : i32
    %c0_i32_0 = arith.constant 0 : i32
    %c0_i32_1 = arith.constant 0 : i32
    return %c0_i32, %c0_i32_0 : i32, i32
  }
  func.func @transform_2(%arg0: i32, %arg1: i32) -> (i32, i32) {
    %c0_i32 = arith.constant 0 : i32
    %c0_i32_0 = arith.constant 0 : i32
    %c0_i32_1 = arith.constant 0 : i32
    return %c0_i32, %c0_i32_0 : i32, i32
  }
  func.func @transform_3(%arg0: i32, %arg1: i32) -> (i32, i32) {
    %c0_i32 = arith.constant 0 : i32
    %c0_i32_0 = arith.constant 0 : i32
    %c0_i32_1 = arith.constant 0 : i32
    return %c0_i32, %c0_i32_0 : i32, i32
  }
  func.func @transform_4(%arg0: i32, %arg1: i32) -> (i32, i32) {
    %c0_i32 = arith.constant 0 : i32
    %c0_i32_0 = arith.constant 0 : i32
    %c0_i32_1 = arith.constant 0 : i32
    return %c0_i32, %c0_i32_0 : i32, i32
  }
  func.func @transform_5(%arg0: i32, %arg1: i32) -> (i32, i32) {
    %c0_i32 = arith.constant 0 : i32
    %c0_i32_0 = arith.constant 0 : i32
    %c0_i32_1 = arith.constant 0 : i32
    return %c0_i32, %c0_i32_0 : i32, i32
  }
  func.func @transform_6(%arg0: i32, %arg1: i32) -> (i32, i32) {
    %c0_i32 = arith.constant 0 : i32
    %c0_i32_0 = arith.constant 0 : i32
    %c0_i32_1 = arith.constant 0 : i32
    return %c0_i32, %c0_i32_0 : i32, i32
  }
  func.func @transform_7(%arg0: i32, %arg1: i32) -> (i32, i32) {
    %c0_i32 = arith.constant 0 : i32
    %c0_i32_0 = arith.constant 0 : i32
    %c0_i32_1 = arith.constant 0 : i32
    return %c0_i32, %c0_i32_0 : i32, i32
  }
  func.func @transform_8(%arg0: i32, %arg1: i32) -> (i32, i32) {
    %c0_i32 = arith.constant 0 : i32
    %c0_i32_0 = arith.constant 0 : i32
    %c0_i32_1 = arith.constant 0 : i32
    return %c0_i32, %c0_i32_0 : i32, i32
  }
  func.func @transform_9(%arg0: i32, %arg1: i32) -> (i32, i32) {
    %c0_i32 = arith.constant 0 : i32
    %c0_i32_0 = arith.constant 0 : i32
    %c0_i32_1 = arith.constant 0 : i32
    return %c0_i32, %c0_i32_0 : i32, i32
  }
  func.func @transform_10(%arg0: i32, %arg1: i32) -> (i32, i32) {
    %c0_i32 = arith.constant 0 : i32
    %c0_i32_0 = arith.constant 0 : i32
    %c0_i32_1 = arith.constant 0 : i32
    return %c0_i32, %c0_i32_0 : i32, i32
  }
  func.func @transform_11(%arg0: i32, %arg1: i32) -> (i32, i32, i32) {
    %c0_i32 = arith.constant 0 : i32
    %c0_i32_0 = arith.constant 0 : i32
    return %arg0, %c0_i32, %arg1 : i32, i32, i32
  }
}

</mosaic_0001>

<llo_original>
// kernel: tpu_custom_call.1
$region0: #{tpu_custom_call.1}
  #allocation0 [shape = 'u32[]', space=smem, size = 0x4, offset = 0x4, fixed_abs, tag = 'smem constant byte address 0x4 - core index']
  #allocation1 [shape = 'u32[72,128]{1,0:T(1,128)}', space=vmem, size = 0x9000, scoped, tag = 'internal scratch']
  %s0 = inlined_call_operand.vmem [shape: f32[2,3,256], index: 0, kind: input, shape index: {}]
  %s1 = inlined_call_operand.vmem [shape: f32[64,3], index: 1, kind: input, shape index: {}]
  %s2 = inlined_call_operand.vmem [shape: f32[64,1], index: 2, kind: input, shape index: {}]
  %s3 = inlined_call_operand.vmem [shape: bf16[64,64], index: 3, kind: input, shape index: {}]
  %s4 = inlined_call_operand.vmem [shape: bf16[64,1], index: 4, kind: input, shape index: {}]
  %s5 = inlined_call_operand.vmem [shape: bf16[64,64], index: 5, kind: input, shape index: {}]
  %s6 = inlined_call_operand.vmem [shape: bf16[64,1], index: 6, kind: input, shape index: {}]
  %s7 = inlined_call_operand.vmem [shape: bf16[128,64], index: 7, kind: input, shape index: {}]
  %s8 = inlined_call_operand.vmem [shape: bf16[128,1], index: 8, kind: input, shape index: {}]
  %s9 = inlined_call_operand.vmem [shape: bf16[128,128], index: 9, kind: input, shape index: {}]
  %s10 = inlined_call_operand.vmem [shape: bf16[128,1], index: 10, kind: input, shape index: {}]
  %s11 = inlined_call_operand.vmem [shape: bf16[2,128,200], index: 11, kind: output, shape index: {}]
  %s12 = sld [smem:[#allocation0]]
  $region77: #{tpu_custom_call.1} parent=0
    _
  %s14 = ssub.s32 1, %s12
  %s15 = scalar_select 0, %s14, %s12
  loop: start=0, step=1, limit=4
  $region2: #{tpu_custom_call.1} parent=0 // loop_pre_header
    _
  $region3: #{tpu_custom_call.1} parent=0 // loop_header
    %s17 = sphi 0, %s21
    %p18 = scmp.ge.s32.totalorder %s17, 4
    %s24 = sphi 0, %s36
    %s25 = sphi 0, %s32
    %s26 = sphi 0, %s24
    %s27 = sphi 0, %s25
    %s28 = sphi 0, %s26
    %s29 = sphi 0, %s27
    %s41 = sphi 0, %s43
    %s44 = sphi 0, %s41
    %s45 = sphi 0, %s44
    %s61 = sphi 0, %s45
    %s65 = sphi 0, %s65
    %s67 = sphi 0, %s65
    %s68 = sphi 0, %s67
    %s82 = sphi 0, %s68
    %s86 = sphi 0, %s86
    %s88 = sphi 0, %s86
    %s89 = sphi 0, %s88
    %s103 = sphi 0, %s89
    %s107 = sphi 0, %s107
    %s109 = sphi 0, %s107
    %s110 = sphi 0, %s109
    %s124 = sphi 0, %s110
    %s128 = sphi 0, %s128
    %s130 = sphi 0, %s128
    %s131 = sphi 0, %s130
    %s145 = sphi 0, %s131
    %s149 = sphi 0, %s149
    %s151 = sphi 0, %s149
    %s152 = sphi 0, %s151
    %s166 = sphi 0, %s152
    %s170 = sphi 0, %s170
    %s172 = sphi 0, %s170
    %s173 = sphi 0, %s172
    %s187 = sphi 0, %s173
    %s191 = sphi 0, %s191
    %s193 = sphi 0, %s191
    %s194 = sphi 0, %s193
    %s208 = sphi 0, %s194
    %s212 = sphi 0, %s212
    %s214 = sphi 0, %s212
    %s215 = sphi 0, %s214
    %s229 = sphi 0, %s215
    %s233 = sphi 0, %s233
    %s235 = sphi 0, %s233
    %s236 = sphi 0, %s235
    %s250 = sphi 0, %s236
    %s254 = sphi 0, %s254
    %s256 = sphi 0, %s254
    %s257 = sphi 0, %s256
    %s271 = sphi 0, %s257
    %s279 = sphi 0, %s281
    %s282 = sphi 0, %s279
    %s283 = sphi 0, %s282
    %s299 = sphi 0, %s283
  $region4: #{tpu_custom_call.1} parent=0 // loop_header_branch
    %20 = sbr.rel (%p18) target = $region8
  $region5: #{tpu_custom_call.1} parent=0 // loop_body
    %s22 = ssub.s32 %s17, 1
    %s23 = ssub.s32 %s17, 2
    %s30 = sadd.s32 1, %s25
    %p31 = scmp.ge.s32.totalorder %s30, 1
    %s32 = scalar_select %p31, 0, %s30
    %s33 = sadd.s32 1, %s24
    %s34 = scalar_select %p31, %s33, %s24
    %p35 = scmp.ge.s32.totalorder %s34, 2
    %s36 = scalar_select %p35, 0, %s34
    %s37 = ssub.s32 %s24, %s36
    %s38 = ssub.s32 %s25, %s32
    %s39 = sor.u32 %s37, %s38
    %p40 = scmp.eq.s32.totalorder %s39, 0
    %s42 = sadd.s32 %s41, 1
    %s43 = scalar_select %p40, %s41, %s42
    %p46 = pneg %p40
    %p47 = scmp.eq.s32.totalorder %s17, 1
    %p48 = por %p46, %p47
    %p49 = scmp.ne.s32.totalorder %s41, %s44
    %p50 = scmp.eq.s32.totalorder %s17, 0
    %p51 = por %p49, %p50
    %p52 = scmp.ne.s32.totalorder %s41, %s44
    %p53 = scmp.eq.s32.totalorder %s22, 1
    %p54 = por %p52, %p53
    %p55 = scmp.ne.s32.totalorder %s44, %s45
    %p56 = scmp.eq.s32.totalorder %s22, 0
    %p57 = por %p55, %p56
    %p58 = scmp.ne.s32.totalorder %s44, %s45
    %p59 = scmp.eq.s32.totalorder %s23, 1
    %p60 = por %p58, %p59
    %p62 = scmp.ne.s32.totalorder %s45, %s61
    %p63 = scmp.eq.s32.totalorder %s23, 0
    %p64 = por %p62, %p63
    %s66 = sadd.s32 %s65, 1
    %p69 = scmp.eq.s32.totalorder %s17, 1
    %p70 = scmp.ne.s32.totalorder %s65, %s67
    %p71 = scmp.eq.s32.totalorder %s17, 0
    %p72 = por %p70, %p71
    %p73 = scmp.ne.s32.totalorder %s65, %s67
    %p74 = scmp.eq.s32.totalorder %s22, 1
    %p75 = por %p73, %p74
    %p76 = scmp.ne.s32.totalorder %s67, %s68
    %p77 = scmp.eq.s32.totalorder %s22, 0
    %p78 = por %p76, %p77
    %p79 = scmp.ne.s32.totalorder %s67, %s68
    %p80 = scmp.eq.s32.totalorder %s23, 1
    %p81 = por %p79, %p80
    %p83 = scmp.ne.s32.totalorder %s68, %s82
    %p84 = scmp.eq.s32.totalorder %s23, 0
    %p85 = por %p83, %p84
    %s87 = sadd.s32 %s86, 1
    %p90 = scmp.eq.s32.totalorder %s17, 1
    %p91 = scmp.ne.s32.totalorder %s86, %s88
    %p92 = scmp.eq.s32.totalorder %s17, 0
    %p93 = por %p91, %p92
    %p94 = scmp.ne.s32.totalorder %s86, %s88
    %p95 = scmp.eq.s32.totalorder %s22, 1
    %p96 = por %p94, %p95
    %p97 = scmp.ne.s32.totalorder %s88, %s89
    %p98 = scmp.eq.s32.totalorder %s22, 0
    %p99 = por %p97, %p98
    %p100 = scmp.ne.s32.totalorder %s88, %s89
    %p101 = scmp.eq.s32.totalorder %s23, 1
    %p102 = por %p100, %p101
    %p104 = scmp.ne.s32.totalorder %s89, %s103
    %p105 = scmp.eq.s32.totalorder %s23, 0
    %p106 = por %p104, %p105
    %s108 = sadd.s32 %s107, 1
    %p111 = scmp.eq.s32.totalorder %s17, 1
    %p112 = scmp.ne.s32.totalorder %s107, %s109
    %p113 = scmp.eq.s32.totalorder %s17, 0
    %p114 = por %p112, %p113
    %p115 = scmp.ne.s32.totalorder %s107, %s109
    %p116 = scmp.eq.s32.totalorder %s22, 1
    %p117 = por %p115, %p116
    %p118 = scmp.ne.s32.totalorder %s109, %s110
    %p119 = scmp.eq.s32.totalorder %s22, 0
    %p120 = por %p118, %p119
    %p121 = scmp.ne.s32.totalorder %s109, %s110
    %p122 = scmp.eq.s32.totalorder %s23, 1
    %p123 = por %p121, %p122
    %p125 = scmp.ne.s32.totalorder %s110, %s124
    %p126 = scmp.eq.s32.totalorder %s23, 0
    %p127 = por %p125, %p126
    %s129 = sadd.s32 %s128, 1
    %p132 = scmp.eq.s32.totalorder %s17, 1
    %p133 = scmp.ne.s32.totalorder %s128, %s130
    %p134 = scmp.eq.s32.totalorder %s17, 0
    %p135 = por %p133, %p134
    %p136 = scmp.ne.s32.totalorder %s128, %s130
    %p137 = scmp.eq.s32.totalorder %s22, 1
    %p138 = por %p136, %p137
    %p139 = scmp.ne.s32.totalorder %s130, %s131
    %p140 = scmp.eq.s32.totalorder %s22, 0
    %p141 = por %p139, %p140
    %p142 = scmp.ne.s32.totalorder %s130, %s131
    %p143 = scmp.eq.s32.totalorder %s23, 1
    %p144 = por %p142, %p143
    %p146 = scmp.ne.s32.totalorder %s131, %s145
    %p147 = scmp.eq.s32.totalorder %s23, 0
    %p148 = por %p146, %p147
    %s150 = sadd.s32 %s149, 1
    %p153 = scmp.eq.s32.totalorder %s17, 1
    %p154 = scmp.ne.s32.totalorder %s149, %s151
    %p155 = scmp.eq.s32.totalorder %s17, 0
    %p156 = por %p154, %p155
    %p157 = scmp.ne.s32.totalorder %s149, %s151
    %p158 = scmp.eq.s32.totalorder %s22, 1
    %p159 = por %p157, %p158
    %p160 = scmp.ne.s32.totalorder %s151, %s152
    %p161 = scmp.eq.s32.totalorder %s22, 0
    %p162 = por %p160, %p161
    %p163 = scmp.ne.s32.totalorder %s151, %s152
    %p164 = scmp.eq.s32.totalorder %s23, 1
    %p165 = por %p163, %p164
    %p167 = scmp.ne.s32.totalorder %s152, %s166
    %p168 = scmp.eq.s32.totalorder %s23, 0
    %p169 = por %p167, %p168
    %s171 = sadd.s32 %s170, 1
    %p174 = scmp.eq.s32.totalorder %s17, 1
    %p175 = scmp.ne.s32.totalorder %s170, %s172
    %p176 = scmp.eq.s32.totalorder %s17, 0
    %p177 = por %p175, %p176
    %p178 = scmp.ne.s32.totalorder %s170, %s172
    %p179 = scmp.eq.s32.totalorder %s22, 1
    %p180 = por %p178, %p179
    %p181 = scmp.ne.s32.totalorder %s172, %s173
    %p182 = scmp.eq.s32.totalorder %s22, 0
    %p183 = por %p181, %p182
    %p184 = scmp.ne.s32.totalorder %s172, %s173
    %p185 = scmp.eq.s32.totalorder %s23, 1
    %p186 = por %p184, %p185
    %p188 = scmp.ne.s32.totalorder %s173, %s187
    %p189 = scmp.eq.s32.totalorder %s23, 0
    %p190 = por %p188, %p189
    %s192 = sadd.s32 %s191, 1
    %p195 = scmp.eq.s32.totalorder %s17, 1
    %p196 = scmp.ne.s32.totalorder %s191, %s193
    %p197 = scmp.eq.s32.totalorder %s17, 0
    %p198 = por %p196, %p197
    %p199 = scmp.ne.s32.totalorder %s191, %s193
    %p200 = scmp.eq.s32.totalorder %s22, 1
    %p201 = por %p199, %p200
    %p202 = scmp.ne.s32.totalorder %s193, %s194
    %p203 = scmp.eq.s32.totalorder %s22, 0
    %p204 = por %p202, %p203
    %p205 = scmp.ne.s32.totalorder %s193, %s194
    %p206 = scmp.eq.s32.totalorder %s23, 1
    %p207 = por %p205, %p206
    %p209 = scmp.ne.s32.totalorder %s194, %s208
    %p210 = scmp.eq.s32.totalorder %s23, 0
    %p211 = por %p209, %p210
    %s213 = sadd.s32 %s212, 1
    %p216 = scmp.eq.s32.totalorder %s17, 1
    %p217 = scmp.ne.s32.totalorder %s212, %s214
    %p218 = scmp.eq.s32.totalorder %s17, 0
    %p219 = por %p217, %p218
    %p220 = scmp.ne.s32.totalorder %s212, %s214
    %p221 = scmp.eq.s32.totalorder %s22, 1
    %p222 = por %p220, %p221
    %p223 = scmp.ne.s32.totalorder %s214, %s215
    %p224 = scmp.eq.s32.totalorder %s22, 0
    %p225 = por %p223, %p224
    %p226 = scmp.ne.s32.totalorder %s214, %s215
    %p227 = scmp.eq.s32.totalorder %s23, 1
    %p228 = por %p226, %p227
    %p230 = scmp.ne.s32.totalorder %s215, %s229
    %p231 = scmp.eq.s32.totalorder %s23, 0
    %p232 = por %p230, %p231
    %s234 = sadd.s32 %s233, 1
    %p237 = scmp.eq.s32.totalorder %s17, 1
    %p238 = scmp.ne.s32.totalorder %s233, %s235
    %p239 = scmp.eq.s32.totalorder %s17, 0
    %p240 = por %p238, %p239
    %p241 = scmp.ne.s32.totalorder %s233, %s235
    %p242 = scmp.eq.s32.totalorder %s22, 1
    %p243 = por %p241, %p242
    %p244 = scmp.ne.s32.totalorder %s235, %s236
    %p245 = scmp.eq.s32.totalorder %s22, 0
    %p246 = por %p244, %p245
    %p247 = scmp.ne.s32.totalorder %s235, %s236
    %p248 = scmp.eq.s32.totalorder %s23, 1
    %p249 = por %p247, %p248
    %p251 = scmp.ne.s32.totalorder %s236, %s250
    %p252 = scmp.eq.s32.totalorder %s23, 0
    %p253 = por %p251, %p252
    %s255 = sadd.s32 %s254, 1
    %p258 = scmp.eq.s32.totalorder %s17, 1
    %p259 = scmp.ne.s32.totalorder %s254, %s256
    %p260 = scmp.eq.s32.totalorder %s17, 0
    %p261 = por %p259, %p260
    %p262 = scmp.ne.s32.totalorder %s254, %s256
    %p263 = scmp.eq.s32.totalorder %s22, 1
    %p264 = por %p262, %p263
    %p265 = scmp.ne.s32.totalorder %s256, %s257
    %p266 = scmp.eq.s32.totalorder %s22, 0
    %p267 = por %p265, %p266
    %p268 = scmp.ne.s32.totalorder %s256, %s257
    %p269 = scmp.eq.s32.totalorder %s23, 1
    %p270 = por %p268, %p269
    %p272 = scmp.ne.s32.totalorder %s257, %s271
    %p273 = scmp.eq.s32.totalorder %s23, 0
    %p274 = por %p272, %p273
    %s275 = ssub.s32 %s24, %s36
    %s276 = ssub.s32 %s25, %s32
    %s277 = sor.u32 %s275, %s276
    %p278 = scmp.eq.s32.totalorder %s277, 0
    %s280 = sadd.s32 %s279, 1
    %s281 = scalar_select %p278, %s279, %s280
    %p284 = pneg %p278
    %p285 = scmp.eq.s32.totalorder %s17, 1
    %p286 = por %p284, %p285
    %p287 = scmp.ne.s32.totalorder %s279, %s282
    %p288 = scmp.eq.s32.totalorder %s17, 0
    %p289 = por %p287, %p288
    %p290 = scmp.ne.s32.totalorder %s279, %s282
    %p291 = scmp.eq.s32.totalorder %s22, 1
    %p292 = por %p290, %p291
    %p293 = scmp.ne.s32.totalorder %s282, %s283
    %p294 = scmp.eq.s32.totalorder %s22, 0
    %p295 = por %p293, %p294
    %p296 = scmp.ne.s32.totalorder %s282, %s283
    %p297 = scmp.eq.s32.totalorder %s23, 1
    %p298 = por %p296, %p297
    %p300 = scmp.ne.s32.totalorder %s283, %s299
    %p301 = scmp.eq.s32.totalorder %s23, 0
    %p302 = por %p300, %p301
    %p303 = scmp.le.s32.totalorder 1, %s17
    %p304 = scmp.lt.s32.totalorder %s17, 3
    %p305 = pnand %p303, %p304
    %p306 = pneg %p305
    // Predicated region
    $region9: #{tpu_custom_call.1} parent=5 // pred_check
      _
    $region10: #{tpu_custom_call.1} parent=5 // pred_check_branch
      %308 = sbr.rel (%p305) target = $region12
    $region11: #{tpu_custom_call.1} parent=5 // pred_region
      %s309 = ssub.s32 %s17, 1
      // Predicated region
      $region13: #{tpu_custom_call.1} parent=11 // pred_check
        %p310 = pneg %p78
      $region14: #{tpu_custom_call.1} parent=11 // pred_check_branch
        %312 = sbr.rel (%p310) target = $region16
      $region15: #{tpu_custom_call.1} parent=11 // pred_region
        _
      $region16: #{tpu_custom_call.1} parent=11 // pred_fallthru
        _
      // Predicated region
      $region17: #{tpu_custom_call.1} parent=11 // pred_check
        %p313 = pneg %p99
      $region18: #{tpu_custom_call.1} parent=11 // pred_check_branch
        %315 = sbr.rel (%p313) target = $region20
      $region19: #{tpu_custom_call.1} parent=11 // pred_region
        _
      $region20: #{tpu_custom_call.1} parent=11 // pred_fallthru
        _
      // Predicated region
      $region21: #{tpu_custom_call.1} parent=11 // pred_check
        %p316 = pneg %p120
      $region22: #{tpu_custom_call.1} parent=11 // pred_check_branch
        %318 = sbr.rel (%p316) target = $region24
      $region23: #{tpu_custom_call.1} parent=11 // pred_region
        _
      $region24: #{tpu_custom_call.1} parent=11 // pred_fallthru
        _
      // Predicated region
      $region25: #{tpu_custom_call.1} parent=11 // pred_check
        %p319 = pneg %p141
      $region26: #{tpu_custom_call.1} parent=11 // pred_check_branch
        %321 = sbr.rel (%p319) target = $region28
      $region27: #{tpu_custom_call.1} parent=11 // pred_region
        _
      $region28: #{tpu_custom_call.1} parent=11 // pred_fallthru
        _
      // Predicated region
      $region29: #{tpu_custom_call.1} parent=11 // pred_check
        %p322 = pneg %p162
      $region30: #{tpu_custom_call.1} parent=11 // pred_check_branch
        %324 = sbr.rel (%p322) target = $region32
      $region31: #{tpu_custom_call.1} parent=11 // pred_region
        _
      $region32: #{tpu_custom_call.1} parent=11 // pred_fallthru
        _
      // Predicated region
      $region33: #{tpu_custom_call.1} parent=11 // pred_check
        %p325 = pneg %p183
      $region34: #{tpu_custom_call.1} parent=11 // pred_check_branch
        %327 = sbr.rel (%p325) target = $region36
      $region35: #{tpu_custom_call.1} parent=11 // pred_region
        _
      $region36: #{tpu_custom_call.1} parent=11 // pred_fallthru
        _
      // Predicated region
      $region37: #{tpu_custom_call.1} parent=11 // pred_check
        %p328 = pneg %p204
      $region38: #{tpu_custom_call.1} parent=11 // pred_check_branch
        %330 = sbr.rel (%p328) target = $region40
      $region39: #{tpu_custom_call.1} parent=11 // pred_region
        _
      $region40: #{tpu_custom_call.1} parent=11 // pred_fallthru
        _
      // Predicated region
      $region41: #{tpu_custom_call.1} parent=11 // pred_check
        %p331 = pneg %p225
      $region42: #{tpu_custom_call.1} parent=11 // pred_check_branch
        %333 = sbr.rel (%p331) target = $region44
      $region43: #{tpu_custom_call.1} parent=11 // pred_region
        _
      $region44: #{tpu_custom_call.1} parent=11 // pred_fallthru
        _
      // Predicated region
      $region45: #{tpu_custom_call.1} parent=11 // pred_check
        %p334 = pneg %p246
      $region46: #{tpu_custom_call.1} parent=11 // pred_check_branch
        %336 = sbr.rel (%p334) target = $region48
      $region47: #{tpu_custom_call.1} parent=11 // pred_region
        _
      $region48: #{tpu_custom_call.1} parent=11 // pred_fallthru
        _
      // Predicated region
      $region49: #{tpu_custom_call.1} parent=11 // pred_check
        %p337 = pneg %p267
      $region50: #{tpu_custom_call.1} parent=11 // pred_check_branch
        %339 = sbr.rel (%p337) target = $region52
      $region51: #{tpu_custom_call.1} parent=11 // pred_region
        _
      $region52: #{tpu_custom_call.1} parent=11 // pred_fallthru
        _
    $region12: #{tpu_custom_call.1} parent=5 // pred_fallthru
      _
    %p340 = scmp.lt.s32.totalorder %s17, 2
    // Predicated region
    $region53: #{tpu_custom_call.1} parent=5 // pred_check
      %p341 = pneg %p340
    $region54: #{tpu_custom_call.1} parent=5 // pred_check_branch
      %343 = sbr.rel (%p341) target = $region56
    $region55: #{tpu_custom_call.1} parent=5 // pred_region
      // Predicated region
      $region57: #{tpu_custom_call.1} parent=55 // pred_check
        %p344 = pneg %p51
      $region58: #{tpu_custom_call.1} parent=55 // pred_check_branch
        %346 = sbr.rel (%p344) target = $region60
      $region59: #{tpu_custom_call.1} parent=55 // pred_region
        %s347 = smul.u32 2, %s25
        %p348 = scmp.lt.s32.totalorder %s24, 1
        %s349 = scalar_select %p348, %s24, 1
        %p350 = scmp.lt.s32.totalorder %s347, 1
        %s351 = scalar_select %p350, %s347, 1
        %s352 = smul.addr %s349, 2
        %s353 = sadd.s32 %s351, %s352
        %s354 = smul.addr %s353, 4
        %s355 = scalar_lea.vmem %s0, %s354
        %s356 = smul.u32 2, %s25
      $region60: #{tpu_custom_call.1} parent=55 // pred_fallthru
        _
    $region56: #{tpu_custom_call.1} parent=5 // pred_fallthru
      _
    %p357 = scmp.le.s32.totalorder 1, %s17
    %p358 = scmp.lt.s32.totalorder %s17, 3
    %p359 = pnand %p357, %p358
    %p360 = pneg %p359
    // Predicated region
    $region61: #{tpu_custom_call.1} parent=5 // pred_check
      _
    $region62: #{tpu_custom_call.1} parent=5 // pred_check_branch
      %362 = sbr.rel (%p359) target = $region64
    $region63: #{tpu_custom_call.1} parent=5 // pred_region
      %s363 = ssub.s32 %s17, 1
      %s364 = smul.u32 2, %s27
      %p365 = scmp.lt.s32.totalorder %s26, 1
      %s366 = scalar_select %p365, %s26, 1
      %p367 = scmp.lt.s32.totalorder %s364, 1
      %s368 = scalar_select %p367, %s364, 1
      %s369 = smul.addr %s366, 2
      %s370 = sadd.s32 %s368, %s369
      %s371 = smul.addr %s370, 4
      %s372 = scalar_lea.vmem %s0, %s371
      %p373 = pneg %p57
      %p374 = pneg %p54
      %p375 = pneg %p78
      %p376 = pneg %p75
      %p377 = pneg %p99
      %p378 = pneg %p96
      %p379 = pneg %p120
      %p380 = pneg %p117
      %p381 = pneg %p141
      %p382 = pneg %p138
      %p383 = pneg %p162
      %p384 = pneg %p159
      %p385 = pneg %p183
      %p386 = pneg %p180
      %p387 = pneg %p204
      %p388 = pneg %p201
      %p389 = pneg %p225
      %p390 = pneg %p222
      %p391 = pneg %p246
      %p392 = pneg %p243
      %p393 = pneg %p267
      %p394 = pneg %p264
      %p395 = pneg %p295
      %p396 = pneg %p292
      %s397 = smul.u32 2, %s27
      %p398 = scmp.lt.s32.totalorder %s26, 1
      %s399 = scalar_select %p398, %s26, 1
      %p400 = scmp.lt.s32.totalorder %s397, 1
      %s401 = scalar_select %p400, %s397, 1
      %s402 = smul.addr %s399, 32
      %s403 = sadd.s32 %s401, %s402
      %s404 = smul.addr %s403, 4
      %s405 = scalar_lea.vmem %s11, %s404
      %s406 = smul.u32 2, %s27
      %p407 = scmp.lt.s32.totalorder %s26, 1
      %s408 = scalar_select %p407, %s26, 1
      %p409 = scmp.lt.s32.totalorder %s406, 1
      %s410 = scalar_select %p409, %s406, 1
      %s411 = smul.addr %s408, 2
      %s412 = sadd.s32 %s410, %s411
      %s413 = smul.addr %s412, 4
      %s414 = scalar_lea.vmem %s0, %s413
      %s415 = smul.u32 2, %s27
      %s416 = smul.u32 2, %s27
      %p417 = scmp.lt.s32.totalorder %s26, 1
      %s418 = scalar_select %p417, %s26, 1
      %p419 = scmp.lt.s32.totalorder %s416, 1
      %s420 = scalar_select %p419, %s416, 1
      %s421 = smul.addr %s418, 32
      %s422 = sadd.s32 %s420, %s421
      %s423 = smul.addr %s422, 4
      %s424 = scalar_lea.vmem %s11, %s423
      %s425 = smul.u32 2, %s27
      %v427 = vld [vmem:[%s414] sm:$0x77]
      %v428 = vld [vmem:[%s1] sm:$0xff]
      %v429 = vld [vmem:[%s1 + $0x8] sm:$0xff]
      %v430 = vld [vmem:[%s1 + $0x10] sm:$0xff]
      %v431 = vld [vmem:[%s1 + $0x18] sm:$0xff]
      %v432 = vld [vmem:[%s1 + $0x20] sm:$0xff]
      %v433 = vld [vmem:[%s1 + $0x28] sm:$0xff]
      %v434 = vld [vmem:[%s1 + $0x30] sm:$0xff]
      %v435 = vld [vmem:[%s1 + $0x38] sm:$0xff]
      %437 = vset.pattern.permute.xlu0 0
      %438 = vperm.xlu0 %437, %v428
      %v439 = vpop.permute.xlu0 %438
      %442 = vset.pattern.permute.xlu0 0
      %443 = vperm.xlu0 %442, %v429
      %v444 = vpop.permute.xlu0 %443
      %447 = vset.pattern.permute.xlu0 0
      %448 = vperm.xlu0 %447, %v430
      %v449 = vpop.permute.xlu0 %448
      %452 = vset.pattern.permute.xlu0 0
      %453 = vperm.xlu0 %452, %v431
      %v454 = vpop.permute.xlu0 %453
      %457 = vset.pattern.permute.xlu0 0
      %458 = vperm.xlu0 %457, %v432
      %v459 = vpop.permute.xlu0 %458
      %462 = vset.pattern.permute.xlu0 0
      %463 = vperm.xlu0 %462, %v433
      %v464 = vpop.permute.xlu0 %463
      %467 = vset.pattern.permute.xlu0 0
      %468 = vperm.xlu0 %467, %v434
      %v469 = vpop.permute.xlu0 %468
      %472 = vset.pattern.permute.xlu0 0
      %473 = vperm.xlu0 %472, %v435
      %v474 = vpop.permute.xlu0 %473
      %v477 = vperm.slane %v427, 0
      %v478 = vperm.slane %v427, 4
      %v481 = vperm.slane %v477, 0
      %v482 = vperm.slane %v478, 0
      %v483 = vmul.f32 %v439, %v481
      %v484 = vmul.f32 %v439, %v482
      %v485 = vmul.f32 %v444, %v481
      %v486 = vmul.f32 %v444, %v482
      %v487 = vmul.f32 %v449, %v481
      %v488 = vmul.f32 %v449, %v482
      %v489 = vmul.f32 %v454, %v481
      %v490 = vmul.f32 %v454, %v482
      %v491 = vmul.f32 %v459, %v481
      %v492 = vmul.f32 %v459, %v482
      %v493 = vmul.f32 %v464, %v481
      %v494 = vmul.f32 %v464, %v482
      %v495 = vmul.f32 %v469, %v481
      %v496 = vmul.f32 %v469, %v482
      %v497 = vmul.f32 %v474, %v481
      %v498 = vmul.f32 %v474, %v482
      %499 = vset.pattern.permute.xlu0 1
      %500 = vperm.xlu0 %499, %v428
      %v501 = vpop.permute.xlu0 %500
      %503 = vset.pattern.permute.xlu0 1
      %504 = vperm.xlu0 %503, %v429
      %v505 = vpop.permute.xlu0 %504
      %507 = vset.pattern.permute.xlu0 1
      %508 = vperm.xlu0 %507, %v430
      %v509 = vpop.permute.xlu0 %508
      %511 = vset.pattern.permute.xlu0 1
      %512 = vperm.xlu0 %511, %v431
      %v513 = vpop.permute.xlu0 %512
      %515 = vset.pattern.permute.xlu0 1
      %516 = vperm.xlu0 %515, %v432
      %v517 = vpop.permute.xlu0 %516
      %519 = vset.pattern.permute.xlu0 1
      %520 = vperm.xlu0 %519, %v433
      %v521 = vpop.permute.xlu0 %520
      %523 = vset.pattern.permute.xlu0 1
      %524 = vperm.xlu0 %523, %v434
      %v525 = vpop.permute.xlu0 %524
      %527 = vset.pattern.permute.xlu0 1
      %528 = vperm.xlu0 %527, %v435
      %v529 = vpop.permute.xlu0 %528
      %v531 = vperm.slane %v427, 1
      %v532 = vperm.slane %v427, 5
      %v535 = vperm.slane %v531, 1
      %v536 = vperm.slane %v532, 1
      %v537 = vmul.f32 %v501, %v535
      %v538 = vmul.f32 %v501, %v536
      %v539 = vmul.f32 %v505, %v535
      %v540 = vmul.f32 %v505, %v536
      %v541 = vmul.f32 %v509, %v535
      %v542 = vmul.f32 %v509, %v536
      %v543 = vmul.f32 %v513, %v535
      %v544 = vmul.f32 %v513, %v536
      %v545 = vmul.f32 %v517, %v535
      %v546 = vmul.f32 %v517, %v536
      %v547 = vmul.f32 %v521, %v535
      %v548 = vmul.f32 %v521, %v536
      %v549 = vmul.f32 %v525, %v535
      %v550 = vmul.f32 %v525, %v536
      %v551 = vmul.f32 %v529, %v535
      %v552 = vmul.f32 %v529, %v536
      %v553 = vadd.f32 %v483, %v537
      %v554 = vadd.f32 %v484, %v538
      %v555 = vadd.f32 %v485, %v539
      %v556 = vadd.f32 %v486, %v540
      %v557 = vadd.f32 %v487, %v541
      %v558 = vadd.f32 %v488, %v542
      %v559 = vadd.f32 %v489, %v543
      %v560 = vadd.f32 %v490, %v544
      %v561 = vadd.f32 %v491, %v545
      %v562 = vadd.f32 %v492, %v546
      %v563 = vadd.f32 %v493, %v547
      %v564 = vadd.f32 %v494, %v548
      %v565 = vadd.f32 %v495, %v549
      %v566 = vadd.f32 %v496, %v550
      %v567 = vadd.f32 %v497, %v551
      %v568 = vadd.f32 %v498, %v552
      %569 = vset.pattern.permute.xlu0 2
      %570 = vperm.xlu0 %569, %v428
      %v571 = vpop.permute.xlu0 %570
      %573 = vset.pattern.permute.xlu0 2
      %574 = vperm.xlu0 %573, %v429
      %v575 = vpop.permute.xlu0 %574
      %577 = vset.pattern.permute.xlu0 2
      %578 = vperm.xlu0 %577, %v430
      %v579 = vpop.permute.xlu0 %578
      %581 = vset.pattern.permute.xlu0 2
      %582 = vperm.xlu0 %581, %v431
      %v583 = vpop.permute.xlu0 %582
      %585 = vset.pattern.permute.xlu0 2
      %586 = vperm.xlu0 %585, %v432
      %v587 = vpop.permute.xlu0 %586
      %589 = vset.pattern.permute.xlu0 2
      %590 = vperm.xlu0 %589, %v433
      %v591 = vpop.permute.xlu0 %590
      %593 = vset.pattern.permute.xlu0 2
      %594 = vperm.xlu0 %593, %v434
      %v595 = vpop.permute.xlu0 %594
      %597 = vset.pattern.permute.xlu0 2
      %598 = vperm.xlu0 %597, %v435
      %v599 = vpop.permute.xlu0 %598
      %v601 = vperm.slane %v427, 2
      %v602 = vperm.slane %v427, 6
      %v605 = vperm.slane %v601, 2
      %v606 = vperm.slane %v602, 2
      %v607 = vmul.f32 %v571, %v605
      %v608 = vmul.f32 %v571, %v606
      %v609 = vmul.f32 %v575, %v605
      %v610 = vmul.f32 %v575, %v606
      %v611 = vmul.f32 %v579, %v605
      %v612 = vmul.f32 %v579, %v606
      %v613 = vmul.f32 %v583, %v605
      %v614 = vmul.f32 %v583, %v606
      %v615 = vmul.f32 %v587, %v605
      %v616 = vmul.f32 %v587, %v606
      %v617 = vmul.f32 %v591, %v605
      %v618 = vmul.f32 %v591, %v606
      %v619 = vmul.f32 %v595, %v605
      %v620 = vmul.f32 %v595, %v606
      %v621 = vmul.f32 %v599, %v605
      %v622 = vmul.f32 %v599, %v606
      %v623 = vadd.f32 %v553, %v607
      %v624 = vadd.f32 %v554, %v608
      %v625 = vadd.f32 %v555, %v609
      %v626 = vadd.f32 %v556, %v610
      %v627 = vadd.f32 %v557, %v611
      %v628 = vadd.f32 %v558, %v612
      %v629 = vadd.f32 %v559, %v613
      %v630 = vadd.f32 %v560, %v614
      %v631 = vadd.f32 %v561, %v615
      %v632 = vadd.f32 %v562, %v616
      %v633 = vadd.f32 %v563, %v617
      %v634 = vadd.f32 %v564, %v618
      %v635 = vadd.f32 %v565, %v619
      %v636 = vadd.f32 %v566, %v620
      %v637 = vadd.f32 %v567, %v621
      %v638 = vadd.f32 %v568, %v622
      %v639 = vld [vmem:[%s2] sm:$0xff]
      %v640 = vld [vmem:[%s2 + $0x8] sm:$0xff]
      %v641 = vld [vmem:[%s2 + $0x10] sm:$0xff]
      %v642 = vld [vmem:[%s2 + $0x18] sm:$0xff]
      %v643 = vld [vmem:[%s2 + $0x20] sm:$0xff]
      %v644 = vld [vmem:[%s2 + $0x28] sm:$0xff]
      %v645 = vld [vmem:[%s2 + $0x30] sm:$0xff]
      %v646 = vld [vmem:[%s2 + $0x38] sm:$0xff]
      %648 = vset.pattern.permute.xlu0 0
      %649 = vperm.xlu0 %648, %v639
      %v650 = vpop.permute.xlu0 %649
      %653 = vset.pattern.permute.xlu0 0
      %654 = vperm.xlu0 %653, %v640
      %v655 = vpop.permute.xlu0 %654
      %658 = vset.pattern.permute.xlu0 0
      %659 = vperm.xlu0 %658, %v641
      %v660 = vpop.permute.xlu0 %659
      %663 = vset.pattern.permute.xlu0 0
      %664 = vperm.xlu0 %663, %v642
      %v665 = vpop.permute.xlu0 %664
      %668 = vset.pattern.permute.xlu0 0
      %669 = vperm.xlu0 %668, %v643
      %v670 = vpop.permute.xlu0 %669
      %673 = vset.pattern.permute.xlu0 0
      %674 = vperm.xlu0 %673, %v644
      %v675 = vpop.permute.xlu0 %674
      %678 = vset.pattern.permute.xlu0 0
      %679 = vperm.xlu0 %678, %v645
      %v680 = vpop.permute.xlu0 %679
      %683 = vset.pattern.permute.xlu0 0
      %684 = vperm.xlu0 %683, %v646
      %v685 = vpop.permute.xlu0 %684
      %v687 = vadd.f32 %v623, %v650
      %v688 = vadd.f32 %v624, %v650
      %v689 = vadd.f32 %v625, %v655
      %v690 = vadd.f32 %v626, %v655
      %v691 = vadd.f32 %v627, %v660
      %v692 = vadd.f32 %v628, %v660
      %v693 = vadd.f32 %v629, %v665
      %v694 = vadd.f32 %v630, %v665
      %v695 = vadd.f32 %v631, %v670
      %v696 = vadd.f32 %v632, %v670
      %v697 = vadd.f32 %v633, %v675
      %v698 = vadd.f32 %v634, %v675
      %v699 = vadd.f32 %v635, %v680
      %v700 = vadd.f32 %v636, %v680
      %v701 = vadd.f32 %v637, %v685
      %v702 = vadd.f32 %v638, %v685
      %v703 = vmax.f32 %v687, 0.0
      %v704 = vmax.f32 %v688, 0.0
      %v705 = vmax.f32 %v689, 0.0
      %v706 = vmax.f32 %v690, 0.0
      %v707 = vmax.f32 %v691, 0.0
      %v708 = vmax.f32 %v692, 0.0
      %v709 = vmax.f32 %v693, 0.0
      %v710 = vmax.f32 %v694, 0.0
      %v711 = vmax.f32 %v695, 0.0
      %v712 = vmax.f32 %v696, 0.0
      %v713 = vmax.f32 %v697, 0.0
      %v714 = vmax.f32 %v698, 0.0
      %v715 = vmax.f32 %v699, 0.0
      %v716 = vmax.f32 %v700, 0.0
      %v717 = vmax.f32 %v701, 0.0
      %v718 = vmax.f32 %v702, 0.0
      %v719 = vpack.c.bf16 %v705, %v703
      %v720 = vpack.c.bf16 %v706, %v704
      %v721 = vpack.c.bf16 %v709, %v707
      %v722 = vpack.c.bf16 %v710, %v708
      %v723 = vpack.c.bf16 %v713, %v711
      %v724 = vpack.c.bf16 %v714, %v712
      %v725 = vpack.c.bf16 %v717, %v715
      %v726 = vpack.c.bf16 %v718, %v716
      %v727 = vld [vmem:[%s3] sm:$0xf]
      %v728 = vld [vmem:[%s3 + $0x4] sm:$0xf]
      %v729 = vld [vmem:[%s3 + $0x8] sm:$0xf]
      %v730 = vld [vmem:[%s3 + $0xc] sm:$0xf]
      %v731 = vld [vmem:[%s3 + $0x10] sm:$0xf]
      %v732 = vld [vmem:[%s3 + $0x14] sm:$0xf]
      %v733 = vld [vmem:[%s3 + $0x18] sm:$0xf]
      %v734 = vld [vmem:[%s3 + $0x1c] sm:$0xf]
      %v743 = vunpack.c.l.b16 %v727
      %v744 = vunpack.c.l.b16 %v728
      %v745 = vunpack.c.l.b16 %v729
      %v746 = vunpack.c.l.b16 %v730
      %v747 = vunpack.c.l.b16 %v731
      %v748 = vunpack.c.l.b16 %v732
      %v749 = vunpack.c.l.b16 %v733
      %v750 = vunpack.c.l.b16 %v734
      %v751 = vpack.c.b16 %v744, %v743
      %v752 = vpack.c.b16 %v746, %v745
      %v753 = vpack.c.b16 %v748, %v747
      %v754 = vpack.c.b16 %v750, %v749
      %vm755 = vcmask 523264
      %v757 = vsel %vm755, %v751, 0
      %v760 = vsel %vm755, %v752, 0
      %v763 = vsel %vm755, %v753, 0
      %v766 = vsel %vm755, %v754, 0
      %768 = vmatpush.bf16.msra.mxu0 0
      %769 = vmatpush.bf16.msra.mxu0 0
      %770 = vmatpush.bf16.msra.mxu0 0
      %771 = vmatpush.bf16.msra.mxu0 0
      %772 = vmatpush.bf16.msra.mxu0 %v725
      %773 = vmatpush.bf16.msra.mxu0 %v723
      %774 = vmatpush.bf16.msra.mxu0 %v721
      %775 = vmatpush.bf16.msra.mxu0 %v719
      %776 = vmatmul.bf16.gmra.mxu0 %v757
      %v777 = vpop.f32.mrf.mxu0
      %v778 = vadd.f32 0.0, %v777
      %v779 = vpop.f32.mrf.mxu0
      %v780 = vadd.f32 0.0, %v779
      %781 = vmatmul.bf16.gmra.mxu0 %v760
      %v782 = vpop.f32.mrf.mxu0
      %v783 = vadd.f32 0.0, %v782
      %v784 = vpop.f32.mrf.mxu0
      %v785 = vadd.f32 0.0, %v784
      %786 = vmatmul.bf16.gmra.mxu0 %v763
      %v787 = vpop.f32.mrf.mxu0
      %v788 = vadd.f32 0.0, %v787
      %v789 = vpop.f32.mrf.mxu0
      %v790 = vadd.f32 0.0, %v789
      %791 = vmatmul.bf16.gmra.mxu0 %v766
      %v792 = vpop.f32.mrf.mxu0
      %v793 = vadd.f32 0.0, %v792
      %v794 = vpop.f32.mrf.mxu0
      %v795 = vadd.f32 0.0, %v794
      %796 = vdwg.mxu0
      %797 = vmatpush.bf16.msra.mxu0 0
      %798 = vmatpush.bf16.msra.mxu0 0
      %799 = vmatpush.bf16.msra.mxu0 0
      %800 = vmatpush.bf16.msra.mxu0 0
      %801 = vmatpush.bf16.msra.mxu0 %v726
      %802 = vmatpush.bf16.msra.mxu0 %v724
      %803 = vmatpush.bf16.msra.mxu0 %v722
      %804 = vmatpush.bf16.msra.mxu0 %v720
      %805 = vmatmul.bf16.gmra.mxu0 %v757
      %v806 = vpop.f32.mrf.mxu0
      %v807 = vadd.f32 0.0, %v806
      %v808 = vpop.f32.mrf.mxu0
      %v809 = vadd.f32 0.0, %v808
      %810 = vmatmul.bf16.gmra.mxu0 %v760
      %v811 = vpop.f32.mrf.mxu0
      %v812 = vadd.f32 0.0, %v811
      %v813 = vpop.f32.mrf.mxu0
      %v814 = vadd.f32 0.0, %v813
      %815 = vmatmul.bf16.gmra.mxu0 %v763
      %v816 = vpop.f32.mrf.mxu0
      %v817 = vadd.f32 0.0, %v816
      %v818 = vpop.f32.mrf.mxu0
      %v819 = vadd.f32 0.0, %v818
      %820 = vmatmul.bf16.gmra.mxu0 %v766
      %v821 = vpop.f32.mrf.mxu0
      %v822 = vadd.f32 0.0, %v821
      %v823 = vpop.f32.mrf.mxu0
      %v824 = vadd.f32 0.0, %v823
      %825 = vdwg.mxu0
      %v826 = vpack.c.bf16 %v807, %v778
      %v827 = vpack.c.bf16 %v809, %v780
      %v828 = vpack.c.bf16 %v812, %v783
      %v829 = vpack.c.bf16 %v814, %v785
      %v830 = vpack.c.bf16 %v817, %v788
      %v831 = vpack.c.bf16 %v819, %v790
      %v832 = vpack.c.bf16 %v822, %v793
      %v833 = vpack.c.bf16 %v824, %v795
      %v834 = vld [vmem:[%s4] sm:$0xf]
      %v835 = vld [vmem:[%s4 + $0x4] sm:$0xf]
      %v836 = vld [vmem:[%s4 + $0x8] sm:$0xf]
      %v837 = vld [vmem:[%s4 + $0xc] sm:$0xf]
      %v838 = vld [vmem:[%s4 + $0x10] sm:$0xf]
      %v839 = vld [vmem:[%s4 + $0x14] sm:$0xf]
      %v840 = vld [vmem:[%s4 + $0x18] sm:$0xf]
      %v841 = vld [vmem:[%s4 + $0x1c] sm:$0xf]
      %843 = vset.pattern.permute.xlu0 0
      %844 = vperm.xlu0 %843, %v834
      %v845 = vpop.permute.xlu0 %844
      %v848 = vunpack.c.l.s4 839922192
      %v849 = vunpack.c.0.s8 %v848
      %v850 = vperm.slane %v845, %v849
      %852 = vset.pattern.permute.xlu0 0
      %853 = vperm.xlu0 %852, %v835
      %v854 = vpop.permute.xlu0 %853
      %v857 = vunpack.c.l.s4 839922192
      %v858 = vunpack.c.0.s8 %v857
      %v859 = vperm.slane %v854, %v858
      %861 = vset.pattern.permute.xlu0 0
      %862 = vperm.xlu0 %861, %v836
      %v863 = vpop.permute.xlu0 %862
      %v866 = vunpack.c.l.s4 839922192
      %v867 = vunpack.c.0.s8 %v866
      %v868 = vperm.slane %v863, %v867
      %870 = vset.pattern.permute.xlu0 0
      %871 = vperm.xlu0 %870, %v837
      %v872 = vpop.permute.xlu0 %871
      %v875 = vunpack.c.l.s4 839922192
      %v876 = vunpack.c.0.s8 %v875
      %v877 = vperm.slane %v872, %v876
      %879 = vset.pattern.permute.xlu0 0
      %880 = vperm.xlu0 %879, %v838
      %v881 = vpop.permute.xlu0 %880
      %v884 = vunpack.c.l.s4 839922192
      %v885 = vunpack.c.0.s8 %v884
      %v886 = vperm.slane %v881, %v885
      %888 = vset.pattern.permute.xlu0 0
      %889 = vperm.xlu0 %888, %v839
      %v890 = vpop.permute.xlu0 %889
      %v893 = vunpack.c.l.s4 839922192
      %v894 = vunpack.c.0.s8 %v893
      %v895 = vperm.slane %v890, %v894
      %897 = vset.pattern.permute.xlu0 0
      %898 = vperm.xlu0 %897, %v840
      %v899 = vpop.permute.xlu0 %898
      %v902 = vunpack.c.l.s4 839922192
      %v903 = vunpack.c.0.s8 %v902
      %v904 = vperm.slane %v899, %v903
      %906 = vset.pattern.permute.xlu0 0
      %907 = vperm.xlu0 %906, %v841
      %v908 = vpop.permute.xlu0 %907
      %v911 = vunpack.c.l.s4 839922192
      %v912 = vunpack.c.0.s8 %v911
      %v913 = vperm.slane %v908, %v912
      %v914 = vunpack.c.l.bf16 %v826
      %v915 = vunpack.c.h.bf16 %v826
      %v916 = vunpack.c.l.bf16 %v827
      %v917 = vunpack.c.h.bf16 %v827
      %v918 = vunpack.c.l.bf16 %v828
      %v919 = vunpack.c.h.bf16 %v828
      %v920 = vunpack.c.l.bf16 %v829
      %v921 = vunpack.c.h.bf16 %v829
      %v922 = vunpack.c.l.bf16 %v830
      %v923 = vunpack.c.h.bf16 %v830
      %v924 = vunpack.c.l.bf16 %v831
      %v925 = vunpack.c.h.bf16 %v831
      %v926 = vunpack.c.l.bf16 %v832
      %v927 = vunpack.c.h.bf16 %v832
      %v928 = vunpack.c.l.bf16 %v833
      %v929 = vunpack.c.h.bf16 %v833
      %v930 = vunpack.c.l.bf16 %v850
      %v931 = vunpack.c.l.bf16 %v859
      %v932 = vunpack.c.l.bf16 %v868
      %v933 = vunpack.c.l.bf16 %v877
      %v934 = vunpack.c.l.bf16 %v886
      %v935 = vunpack.c.l.bf16 %v895
      %v936 = vunpack.c.l.bf16 %v904
      %v937 = vunpack.c.l.bf16 %v913
      %v938 = vadd.f32 %v914, %v930
      %v939 = vadd.f32 %v915, %v930
      %v940 = vadd.f32 %v916, %v931
      %v941 = vadd.f32 %v917, %v931
      %v942 = vadd.f32 %v918, %v932
      %v943 = vadd.f32 %v919, %v932
      %v944 = vadd.f32 %v920, %v933
      %v945 = vadd.f32 %v921, %v933
      %v946 = vadd.f32 %v922, %v934
      %v947 = vadd.f32 %v923, %v934
      %v948 = vadd.f32 %v924, %v935
      %v949 = vadd.f32 %v925, %v935
      %v950 = vadd.f32 %v926, %v936
      %v951 = vadd.f32 %v927, %v936
      %v952 = vadd.f32 %v928, %v937
      %v953 = vadd.f32 %v929, %v937
      %v954 = vpack.c.bf16 %v939, %v938
      %v955 = vpack.c.bf16 %v941, %v940
      %v956 = vpack.c.bf16 %v943, %v942
      %v957 = vpack.c.bf16 %v945, %v944
      %v958 = vpack.c.bf16 %v947, %v946
      %v959 = vpack.c.bf16 %v949, %v948
      %v960 = vpack.c.bf16 %v951, %v950
      %v961 = vpack.c.bf16 %v953, %v952
      %v962 = vunpack.c.l.bf16 %v954
      %v963 = vunpack.c.h.bf16 %v954
      %v964 = vunpack.c.l.bf16 %v955
      %v965 = vunpack.c.h.bf16 %v955
      %v966 = vunpack.c.l.bf16 %v956
      %v967 = vunpack.c.h.bf16 %v956
      %v968 = vunpack.c.l.bf16 %v957
      %v969 = vunpack.c.h.bf16 %v957
      %v970 = vunpack.c.l.bf16 %v958
      %v971 = vunpack.c.h.bf16 %v958
      %v972 = vunpack.c.l.bf16 %v959
      %v973 = vunpack.c.h.bf16 %v959
      %v974 = vunpack.c.l.bf16 %v960
      %v975 = vunpack.c.h.bf16 %v960
      %v976 = vunpack.c.l.bf16 %v961
      %v977 = vunpack.c.h.bf16 %v961
      %v978 = vmax.f32 %v962, 0.0
      %v979 = vmax.f32 %v963, 0.0
      %v980 = vmax.f32 %v964, 0.0
      %v981 = vmax.f32 %v965, 0.0
      %v982 = vmax.f32 %v966, 0.0
      %v983 = vmax.f32 %v967, 0.0
      %v984 = vmax.f32 %v968, 0.0
      %v985 = vmax.f32 %v969, 0.0
      %v986 = vmax.f32 %v970, 0.0
      %v987 = vmax.f32 %v971, 0.0
      %v988 = vmax.f32 %v972, 0.0
      %v989 = vmax.f32 %v973, 0.0
      %v990 = vmax.f32 %v974, 0.0
      %v991 = vmax.f32 %v975, 0.0
      %v992 = vmax.f32 %v976, 0.0
      %v993 = vmax.f32 %v977, 0.0
      %v994 = vpack.c.bf16 %v980, %v978
      %v995 = vpack.c.bf16 %v981, %v979
      %v996 = vpack.c.bf16 %v984, %v982
      %v997 = vpack.c.bf16 %v985, %v983
      %v998 = vpack.c.bf16 %v988, %v986
      %v999 = vpack.c.bf16 %v989, %v987
      %v1000 = vpack.c.bf16 %v992, %v990
      %v1001 = vpack.c.bf16 %v993, %v991
      %v1002 = vld [vmem:[%s5] sm:$0xf]
      %v1003 = vld [vmem:[%s5 + $0x4] sm:$0xf]
      %v1004 = vld [vmem:[%s5 + $0x8] sm:$0xf]
      %v1005 = vld [vmem:[%s5 + $0xc] sm:$0xf]
      %v1006 = vld [vmem:[%s5 + $0x10] sm:$0xf]
      %v1007 = vld [vmem:[%s5 + $0x14] sm:$0xf]
      %v1008 = vld [vmem:[%s5 + $0x18] sm:$0xf]
      %v1009 = vld [vmem:[%s5 + $0x1c] sm:$0xf]
      %v1018 = vunpack.c.l.b16 %v1002
      %v1019 = vunpack.c.l.b16 %v1003
      %v1020 = vunpack.c.l.b16 %v1004
      %v1021 = vunpack.c.l.b16 %v1005
      %v1022 = vunpack.c.l.b16 %v1006
      %v1023 = vunpack.c.l.b16 %v1007
      %v1024 = vunpack.c.l.b16 %v1008
      %v1025 = vunpack.c.l.b16 %v1009
      %v1026 = vpack.c.b16 %v1019, %v1018
      %v1027 = vpack.c.b16 %v1021, %v1020
      %v1028 = vpack.c.b16 %v1023, %v1022
      %v1029 = vpack.c.b16 %v1025, %v1024
      %v1031 = vsel %vm755, %v1026, 0
      %v1034 = vsel %vm755, %v1027, 0
      %v1037 = vsel %vm755, %v1028, 0
      %v1040 = vsel %vm755, %v1029, 0
      %1042 = vmatpush.bf16.msra.mxu0 0
      %1043 = vmatpush.bf16.msra.mxu0 0
      %1044 = vmatpush.bf16.msra.mxu0 0
      %1045 = vmatpush.bf16.msra.mxu0 0
      %1046 = vmatpush.bf16.msra.mxu0 %v1000
      %1047 = vmatpush.bf16.msra.mxu0 %v998
      %1048 = vmatpush.bf16.msra.mxu0 %v996
      %1049 = vmatpush.bf16.msra.mxu0 %v994
      %1050 = vmatmul.bf16.gmra.mxu0 %v1031
      %v1051 = vpop.f32.mrf.mxu0
      %v1052 = vadd.f32 0.0, %v1051
      %v1053 = vpop.f32.mrf.mxu0
      %v1054 = vadd.f32 0.0, %v1053
      %1055 = vmatmul.bf16.gmra.mxu0 %v1034
      %v1056 = vpop.f32.mrf.mxu0
      %v1057 = vadd.f32 0.0, %v1056
      %v1058 = vpop.f32.mrf.mxu0
      %v1059 = vadd.f32 0.0, %v1058
      %1060 = vmatmul.bf16.gmra.mxu0 %v1037
      %v1061 = vpop.f32.mrf.mxu0
      %v1062 = vadd.f32 0.0, %v1061
      %v1063 = vpop.f32.mrf.mxu0
      %v1064 = vadd.f32 0.0, %v1063
      %1065 = vmatmul.bf16.gmra.mxu0 %v1040
      %v1066 = vpop.f32.mrf.mxu0
      %v1067 = vadd.f32 0.0, %v1066
      %v1068 = vpop.f32.mrf.mxu0
      %v1069 = vadd.f32 0.0, %v1068
      %1070 = vdwg.mxu0
      %1071 = vmatpush.bf16.msra.mxu0 0
      %1072 = vmatpush.bf16.msra.mxu0 0
      %1073 = vmatpush.bf16.msra.mxu0 0
      %1074 = vmatpush.bf16.msra.mxu0 0
      %1075 = vmatpush.bf16.msra.mxu0 %v1001
      %1076 = vmatpush.bf16.msra.mxu0 %v999
      %1077 = vmatpush.bf16.msra.mxu0 %v997
      %1078 = vmatpush.bf16.msra.mxu0 %v995
      %1079 = vmatmul.bf16.gmra.mxu0 %v1031
      %v1080 = vpop.f32.mrf.mxu0
      %v1081 = vadd.f32 0.0, %v1080
      %v1082 = vpop.f32.mrf.mxu0
      %v1083 = vadd.f32 0.0, %v1082
      %1084 = vmatmul.bf16.gmra.mxu0 %v1034
      %v1085 = vpop.f32.mrf.mxu0
      %v1086 = vadd.f32 0.0, %v1085
      %v1087 = vpop.f32.mrf.mxu0
      %v1088 = vadd.f32 0.0, %v1087
      %1089 = vmatmul.bf16.gmra.mxu0 %v1037
      %v1090 = vpop.f32.mrf.mxu0
      %v1091 = vadd.f32 0.0, %v1090
      %v1092 = vpop.f32.mrf.mxu0
      %v1093 = vadd.f32 0.0, %v1092
      %1094 = vmatmul.bf16.gmra.mxu0 %v1040
      %v1095 = vpop.f32.mrf.mxu0
      %v1096 = vadd.f32 0.0, %v1095
      %v1097 = vpop.f32.mrf.mxu0
      %v1098 = vadd.f32 0.0, %v1097
      %1099 = vdwg.mxu0
      %v1100 = vpack.c.bf16 %v1081, %v1052
      %v1101 = vpack.c.bf16 %v1083, %v1054
      %v1102 = vpack.c.bf16 %v1086, %v1057
      %v1103 = vpack.c.bf16 %v1088, %v1059
      %v1104 = vpack.c.bf16 %v1091, %v1062
      %v1105 = vpack.c.bf16 %v1093, %v1064
      %v1106 = vpack.c.bf16 %v1096, %v1067
      %v1107 = vpack.c.bf16 %v1098, %v1069
      %v1108 = vld [vmem:[%s6] sm:$0xf]
      %v1109 = vld [vmem:[%s6 + $0x4] sm:$0xf]
      %v1110 = vld [vmem:[%s6 + $0x8] sm:$0xf]
      %v1111 = vld [vmem:[%s6 + $0xc] sm:$0xf]
      %v1112 = vld [vmem:[%s6 + $0x10] sm:$0xf]
      %v1113 = vld [vmem:[%s6 + $0x14] sm:$0xf]
      %v1114 = vld [vmem:[%s6 + $0x18] sm:$0xf]
      %v1115 = vld [vmem:[%s6 + $0x1c] sm:$0xf]
      %1117 = vset.pattern.permute.xlu0 0
      %1118 = vperm.xlu0 %1117, %v1108
      %v1119 = vpop.permute.xlu0 %1118
      %v1122 = vunpack.c.l.s4 839922192
      %v1123 = vunpack.c.0.s8 %v1122
      %v1124 = vperm.slane %v1119, %v1123
      %1126 = vset.pattern.permute.xlu0 0
      %1127 = vperm.xlu0 %1126, %v1109
      %v1128 = vpop.permute.xlu0 %1127
      %v1131 = vunpack.c.l.s4 839922192
      %v1132 = vunpack.c.0.s8 %v1131
      %v1133 = vperm.slane %v1128, %v1132
      %1135 = vset.pattern.permute.xlu0 0
      %1136 = vperm.xlu0 %1135, %v1110
      %v1137 = vpop.permute.xlu0 %1136
      %v1140 = vunpack.c.l.s4 839922192
      %v1141 = vunpack.c.0.s8 %v1140
      %v1142 = vperm.slane %v1137, %v1141
      %1144 = vset.pattern.permute.xlu0 0
      %1145 = vperm.xlu0 %1144, %v1111
      %v1146 = vpop.permute.xlu0 %1145
      %v1149 = vunpack.c.l.s4 839922192
      %v1150 = vunpack.c.0.s8 %v1149
      %v1151 = vperm.slane %v1146, %v1150
      %1153 = vset.pattern.permute.xlu0 0
      %1154 = vperm.xlu0 %1153, %v1112
      %v1155 = vpop.permute.xlu0 %1154
      %v1158 = vunpack.c.l.s4 839922192
      %v1159 = vunpack.c.0.s8 %v1158
      %v1160 = vperm.slane %v1155, %v1159
      %1162 = vset.pattern.permute.xlu0 0
      %1163 = vperm.xlu0 %1162, %v1113
      %v1164 = vpop.permute.xlu0 %1163
      %v1167 = vunpack.c.l.s4 839922192
      %v1168 = vunpack.c.0.s8 %v1167
      %v1169 = vperm.slane %v1164, %v1168
      %1171 = vset.pattern.permute.xlu0 0
      %1172 = vperm.xlu0 %1171, %v1114
      %v1173 = vpop.permute.xlu0 %1172
      %v1176 = vunpack.c.l.s4 839922192
      %v1177 = vunpack.c.0.s8 %v1176
      %v1178 = vperm.slane %v1173, %v1177
      %1180 = vset.pattern.permute.xlu0 0
      %1181 = vperm.xlu0 %1180, %v1115
      %v1182 = vpop.permute.xlu0 %1181
      %v1185 = vunpack.c.l.s4 839922192
      %v1186 = vunpack.c.0.s8 %v1185
      %v1187 = vperm.slane %v1182, %v1186
      %v1188 = vunpack.c.l.bf16 %v1100
      %v1189 = vunpack.c.h.bf16 %v1100
      %v1190 = vunpack.c.l.bf16 %v1101
      %v1191 = vunpack.c.h.bf16 %v1101
      %v1192 = vunpack.c.l.bf16 %v1102
      %v1193 = vunpack.c.h.bf16 %v1102
      %v1194 = vunpack.c.l.bf16 %v1103
      %v1195 = vunpack.c.h.bf16 %v1103
      %v1196 = vunpack.c.l.bf16 %v1104
      %v1197 = vunpack.c.h.bf16 %v1104
      %v1198 = vunpack.c.l.bf16 %v1105
      %v1199 = vunpack.c.h.bf16 %v1105
      %v1200 = vunpack.c.l.bf16 %v1106
      %v1201 = vunpack.c.h.bf16 %v1106
      %v1202 = vunpack.c.l.bf16 %v1107
      %v1203 = vunpack.c.h.bf16 %v1107
      %v1204 = vunpack.c.l.bf16 %v1124
      %v1205 = vunpack.c.l.bf16 %v1133
      %v1206 = vunpack.c.l.bf16 %v1142
      %v1207 = vunpack.c.l.bf16 %v1151
      %v1208 = vunpack.c.l.bf16 %v1160
      %v1209 = vunpack.c.l.bf16 %v1169
      %v1210 = vunpack.c.l.bf16 %v1178
      %v1211 = vunpack.c.l.bf16 %v1187
      %v1212 = vadd.f32 %v1188, %v1204
      %v1213 = vadd.f32 %v1189, %v1204
      %v1214 = vadd.f32 %v1190, %v1205
      %v1215 = vadd.f32 %v1191, %v1205
      %v1216 = vadd.f32 %v1192, %v1206
      %v1217 = vadd.f32 %v1193, %v1206
      %v1218 = vadd.f32 %v1194, %v1207
      %v1219 = vadd.f32 %v1195, %v1207
      %v1220 = vadd.f32 %v1196, %v1208
      %v1221 = vadd.f32 %v1197, %v1208
      %v1222 = vadd.f32 %v1198, %v1209
      %v1223 = vadd.f32 %v1199, %v1209
      %v1224 = vadd.f32 %v1200, %v1210
      %v1225 = vadd.f32 %v1201, %v1210
      %v1226 = vadd.f32 %v1202, %v1211
      %v1227 = vadd.f32 %v1203, %v1211
      %v1228 = vpack.c.bf16 %v1213, %v1212
      %v1229 = vpack.c.bf16 %v1215, %v1214
      %v1230 = vpack.c.bf16 %v1217, %v1216
      %v1231 = vpack.c.bf16 %v1219, %v1218
      %v1232 = vpack.c.bf16 %v1221, %v1220
      %v1233 = vpack.c.bf16 %v1223, %v1222
      %v1234 = vpack.c.bf16 %v1225, %v1224
      %v1235 = vpack.c.bf16 %v1227, %v1226
      %v1236 = vunpack.c.l.bf16 %v1228
      %v1237 = vunpack.c.h.bf16 %v1228
      %v1238 = vunpack.c.l.bf16 %v1229
      %v1239 = vunpack.c.h.bf16 %v1229
      %v1240 = vunpack.c.l.bf16 %v1230
      %v1241 = vunpack.c.h.bf16 %v1230
      %v1242 = vunpack.c.l.bf16 %v1231
      %v1243 = vunpack.c.h.bf16 %v1231
      %v1244 = vunpack.c.l.bf16 %v1232
      %v1245 = vunpack.c.h.bf16 %v1232
      %v1246 = vunpack.c.l.bf16 %v1233
      %v1247 = vunpack.c.h.bf16 %v1233
      %v1248 = vunpack.c.l.bf16 %v1234
      %v1249 = vunpack.c.h.bf16 %v1234
      %v1250 = vunpack.c.l.bf16 %v1235
      %v1251 = vunpack.c.h.bf16 %v1235
      %v1252 = vmax.f32 %v1236, 0.0
      %v1253 = vmax.f32 %v1237, 0.0
      %v1254 = vmax.f32 %v1238, 0.0
      %v1255 = vmax.f32 %v1239, 0.0
      %v1256 = vmax.f32 %v1240, 0.0
      %v1257 = vmax.f32 %v1241, 0.0
      %v1258 = vmax.f32 %v1242, 0.0
      %v1259 = vmax.f32 %v1243, 0.0
      %v1260 = vmax.f32 %v1244, 0.0
      %v1261 = vmax.f32 %v1245, 0.0
      %v1262 = vmax.f32 %v1246, 0.0
      %v1263 = vmax.f32 %v1247, 0.0
      %v1264 = vmax.f32 %v1248, 0.0
      %v1265 = vmax.f32 %v1249, 0.0
      %v1266 = vmax.f32 %v1250, 0.0
      %v1267 = vmax.f32 %v1251, 0.0
      %v1268 = vpack.c.bf16 %v1254, %v1252
      %v1269 = vpack.c.bf16 %v1255, %v1253
      %v1270 = vpack.c.bf16 %v1258, %v1256
      %v1271 = vpack.c.bf16 %v1259, %v1257
      %v1272 = vpack.c.bf16 %v1262, %v1260
      %v1273 = vpack.c.bf16 %v1263, %v1261
      %v1274 = vpack.c.bf16 %v1266, %v1264
      %v1275 = vpack.c.bf16 %v1267, %v1265
      %v1276 = vld [vmem:[%s7] sm:$0xf]
      %v1277 = vld [vmem:[%s7 + $0x4] sm:$0xf]
      %v1278 = vld [vmem:[%s7 + $0x8] sm:$0xf]
      %v1279 = vld [vmem:[%s7 + $0xc] sm:$0xf]
      %v1280 = vld [vmem:[%s7 + $0x10] sm:$0xf]
      %v1281 = vld [vmem:[%s7 + $0x14] sm:$0xf]
      %v1282 = vld [vmem:[%s7 + $0x18] sm:$0xf]
      %v1283 = vld [vmem:[%s7 + $0x1c] sm:$0xf]
      %v1284 = vld [vmem:[%s7 + $0x20] sm:$0xf]
      %v1285 = vld [vmem:[%s7 + $0x24] sm:$0xf]
      %v1286 = vld [vmem:[%s7 + $0x28] sm:$0xf]
      %v1287 = vld [vmem:[%s7 + $0x2c] sm:$0xf]
      %v1288 = vld [vmem:[%s7 + $0x30] sm:$0xf]
      %v1289 = vld [vmem:[%s7 + $0x34] sm:$0xf]
      %v1290 = vld [vmem:[%s7 + $0x38] sm:$0xf]
      %v1291 = vld [vmem:[%s7 + $0x3c] sm:$0xf]
      %v1308 = vunpack.c.l.b16 %v1276
      %v1309 = vunpack.c.l.b16 %v1277
      %v1310 = vunpack.c.l.b16 %v1278
      %v1311 = vunpack.c.l.b16 %v1279
      %v1312 = vunpack.c.l.b16 %v1280
      %v1313 = vunpack.c.l.b16 %v1281
      %v1314 = vunpack.c.l.b16 %v1282
      %v1315 = vunpack.c.l.b16 %v1283
      %v1316 = vunpack.c.l.b16 %v1284
      %v1317 = vunpack.c.l.b16 %v1285
      %v1318 = vunpack.c.l.b16 %v1286
      %v1319 = vunpack.c.l.b16 %v1287
      %v1320 = vunpack.c.l.b16 %v1288
      %v1321 = vunpack.c.l.b16 %v1289
      %v1322 = vunpack.c.l.b16 %v1290
      %v1323 = vunpack.c.l.b16 %v1291
      %v1324 = vpack.c.b16 %v1309, %v1308
      %v1325 = vpack.c.b16 %v1311, %v1310
      %v1326 = vpack.c.b16 %v1313, %v1312
      %v1327 = vpack.c.b16 %v1315, %v1314
      %v1328 = vpack.c.b16 %v1317, %v1316
      %v1329 = vpack.c.b16 %v1319, %v1318
      %v1330 = vpack.c.b16 %v1321, %v1320
      %v1331 = vpack.c.b16 %v1323, %v1322
      %v1333 = vsel %vm755, %v1324, 0
      %v1336 = vsel %vm755, %v1325, 0
      %v1339 = vsel %vm755, %v1326, 0
      %v1342 = vsel %vm755, %v1327, 0
      %v1345 = vsel %vm755, %v1328, 0
      %v1348 = vsel %vm755, %v1329, 0
      %v1351 = vsel %vm755, %v1330, 0
      %v1354 = vsel %vm755, %v1331, 0
      %1356 = vmatpush.bf16.msra.mxu0 0
      %1357 = vmatpush.bf16.msra.mxu0 0
      %1358 = vmatpush.bf16.msra.mxu0 0
      %1359 = vmatpush.bf16.msra.mxu0 0
      %1360 = vmatpush.bf16.msra.mxu0 %v1274
      %1361 = vmatpush.bf16.msra.mxu0 %v1272
      %1362 = vmatpush.bf16.msra.mxu0 %v1270
      %1363 = vmatpush.bf16.msra.mxu0 %v1268
      %1364 = vmatmul.bf16.gmra.mxu0 %v1333
      %v1365 = vpop.f32.mrf.mxu0
      %v1366 = vadd.f32 0.0, %v1365
      %v1367 = vpop.f32.mrf.mxu0
      %v1368 = vadd.f32 0.0, %v1367
      %1369 = vmatmul.bf16.gmra.mxu0 %v1336
      %v1370 = vpop.f32.mrf.mxu0
      %v1371 = vadd.f32 0.0, %v1370
      %v1372 = vpop.f32.mrf.mxu0
      %v1373 = vadd.f32 0.0, %v1372
      %1374 = vmatmul.bf16.gmra.mxu0 %v1339
      %v1375 = vpop.f32.mrf.mxu0
      %v1376 = vadd.f32 0.0, %v1375
      %v1377 = vpop.f32.mrf.mxu0
      %v1378 = vadd.f32 0.0, %v1377
      %1379 = vmatmul.bf16.gmra.mxu0 %v1342
      %v1380 = vpop.f32.mrf.mxu0
      %v1381 = vadd.f32 0.0, %v1380
      %v1382 = vpop.f32.mrf.mxu0
      %v1383 = vadd.f32 0.0, %v1382
      %1384 = vmatmul.bf16.gmra.mxu0 %v1345
      %v1385 = vpop.f32.mrf.mxu0
      %v1386 = vadd.f32 0.0, %v1385
      %v1387 = vpop.f32.mrf.mxu0
      %v1388 = vadd.f32 0.0, %v1387
      %1389 = vmatmul.bf16.gmra.mxu0 %v1348
      %v1390 = vpop.f32.mrf.mxu0
      %v1391 = vadd.f32 0.0, %v1390
      %v1392 = vpop.f32.mrf.mxu0
      %v1393 = vadd.f32 0.0, %v1392
      %1394 = vmatmul.bf16.gmra.mxu0 %v1351
      %v1395 = vpop.f32.mrf.mxu0
      %v1396 = vadd.f32 0.0, %v1395
      %v1397 = vpop.f32.mrf.mxu0
      %v1398 = vadd.f32 0.0, %v1397
      %1399 = vmatmul.bf16.gmra.mxu0 %v1354
      %v1400 = vpop.f32.mrf.mxu0
      %v1401 = vadd.f32 0.0, %v1400
      %v1402 = vpop.f32.mrf.mxu0
      %v1403 = vadd.f32 0.0, %v1402
      %1404 = vdwg.mxu0
      %1405 = vmatpush.bf16.msra.mxu0 0
      %1406 = vmatpush.bf16.msra.mxu0 0
      %1407 = vmatpush.bf16.msra.mxu0 0
      %1408 = vmatpush.bf16.msra.mxu0 0
      %1409 = vmatpush.bf16.msra.mxu0 %v1275
      %1410 = vmatpush.bf16.msra.mxu0 %v1273
      %1411 = vmatpush.bf16.msra.mxu0 %v1271
      %1412 = vmatpush.bf16.msra.mxu0 %v1269
      %1413 = vmatmul.bf16.gmra.mxu0 %v1333
      %v1414 = vpop.f32.mrf.mxu0
      %v1415 = vadd.f32 0.0, %v1414
      %v1416 = vpop.f32.mrf.mxu0
      %v1417 = vadd.f32 0.0, %v1416
      %1418 = vmatmul.bf16.gmra.mxu0 %v1336
      %v1419 = vpop.f32.mrf.mxu0
      %v1420 = vadd.f32 0.0, %v1419
      %v1421 = vpop.f32.mrf.mxu0
      %v1422 = vadd.f32 0.0, %v1421
      %1423 = vmatmul.bf16.gmra.mxu0 %v1339
      %v1424 = vpop.f32.mrf.mxu0
      %v1425 = vadd.f32 0.0, %v1424
      %v1426 = vpop.f32.mrf.mxu0
      %v1427 = vadd.f32 0.0, %v1426
      %1428 = vmatmul.bf16.gmra.mxu0 %v1342
      %v1429 = vpop.f32.mrf.mxu0
      %v1430 = vadd.f32 0.0, %v1429
      %v1431 = vpop.f32.mrf.mxu0
      %v1432 = vadd.f32 0.0, %v1431
      %1433 = vmatmul.bf16.gmra.mxu0 %v1345
      %v1434 = vpop.f32.mrf.mxu0
      %v1435 = vadd.f32 0.0, %v1434
      %v1436 = vpop.f32.mrf.mxu0
      %v1437 = vadd.f32 0.0, %v1436
      %1438 = vmatmul.bf16.gmra.mxu0 %v1348
      %v1439 = vpop.f32.mrf.mxu0
      %v1440 = vadd.f32 0.0, %v1439
      %v1441 = vpop.f32.mrf.mxu0
      %v1442 = vadd.f32 0.0, %v1441
      %1443 = vmatmul.bf16.gmra.mxu0 %v1351
      %v1444 = vpop.f32.mrf.mxu0
      %v1445 = vadd.f32 0.0, %v1444
      %v1446 = vpop.f32.mrf.mxu0
      %v1447 = vadd.f32 0.0, %v1446
      %1448 = vmatmul.bf16.gmra.mxu0 %v1354
      %v1449 = vpop.f32.mrf.mxu0
      %v1450 = vadd.f32 0.0, %v1449
      %v1451 = vpop.f32.mrf.mxu0
      %v1452 = vadd.f32 0.0, %v1451
      %1453 = vdwg.mxu0
      %v1454 = vpack.c.bf16 %v1415, %v1366
      %v1455 = vpack.c.bf16 %v1417, %v1368
      %v1456 = vpack.c.bf16 %v1420, %v1371
      %v1457 = vpack.c.bf16 %v1422, %v1373
      %v1458 = vpack.c.bf16 %v1425, %v1376
      %v1459 = vpack.c.bf16 %v1427, %v1378
      %v1460 = vpack.c.bf16 %v1430, %v1381
      %v1461 = vpack.c.bf16 %v1432, %v1383
      %v1462 = vpack.c.bf16 %v1435, %v1386
      %v1463 = vpack.c.bf16 %v1437, %v1388
      %v1464 = vpack.c.bf16 %v1440, %v1391
      %v1465 = vpack.c.bf16 %v1442, %v1393
      %v1466 = vpack.c.bf16 %v1445, %v1396
      %v1467 = vpack.c.bf16 %v1447, %v1398
      %v1468 = vpack.c.bf16 %v1450, %v1401
      %v1469 = vpack.c.bf16 %v1452, %v1403
      %v1470 = vld [vmem:[%s8] sm:$0xf]
      %v1471 = vld [vmem:[%s8 + $0x4] sm:$0xf]
      %v1472 = vld [vmem:[%s8 + $0x8] sm:$0xf]
      %v1473 = vld [vmem:[%s8 + $0xc] sm:$0xf]
      %v1474 = vld [vmem:[%s8 + $0x10] sm:$0xf]
      %v1475 = vld [vmem:[%s8 + $0x14] sm:$0xf]
      %v1476 = vld [vmem:[%s8 + $0x18] sm:$0xf]
      %v1477 = vld [vmem:[%s8 + $0x1c] sm:$0xf]
      %v1478 = vld [vmem:[%s8 + $0x20] sm:$0xf]
      %v1479 = vld [vmem:[%s8 + $0x24] sm:$0xf]
      %v1480 = vld [vmem:[%s8 + $0x28] sm:$0xf]
      %v1481 = vld [vmem:[%s8 + $0x2c] sm:$0xf]
      %v1482 = vld [vmem:[%s8 + $0x30] sm:$0xf]
      %v1483 = vld [vmem:[%s8 + $0x34] sm:$0xf]
      %v1484 = vld [vmem:[%s8 + $0x38] sm:$0xf]
      %v1485 = vld [vmem:[%s8 + $0x3c] sm:$0xf]
      %1487 = vset.pattern.permute.xlu0 0
      %1488 = vperm.xlu0 %1487, %v1470
      %v1489 = vpop.permute.xlu0 %1488
      %v1492 = vunpack.c.l.s4 839922192
      %v1493 = vunpack.c.0.s8 %v1492
      %v1494 = vperm.slane %v1489, %v1493
      %1496 = vset.pattern.permute.xlu0 0
      %1497 = vperm.xlu0 %1496, %v1471
      %v1498 = vpop.permute.xlu0 %1497
      %v1501 = vunpack.c.l.s4 839922192
      %v1502 = vunpack.c.0.s8 %v1501
      %v1503 = vperm.slane %v1498, %v1502
      %1505 = vset.pattern.permute.xlu0 0
      %1506 = vperm.xlu0 %1505, %v1472
      %v1507 = vpop.permute.xlu0 %1506
      %v1510 = vunpack.c.l.s4 839922192
      %v1511 = vunpack.c.0.s8 %v1510
      %v1512 = vperm.slane %v1507, %v1511
      %1514 = vset.pattern.permute.xlu0 0
      %1515 = vperm.xlu0 %1514, %v1473
      %v1516 = vpop.permute.xlu0 %1515
      %v1519 = vunpack.c.l.s4 839922192
      %v1520 = vunpack.c.0.s8 %v1519
      %v1521 = vperm.slane %v1516, %v1520
      %1523 = vset.pattern.permute.xlu0 0
      %1524 = vperm.xlu0 %1523, %v1474
      %v1525 = vpop.permute.xlu0 %1524
      %v1528 = vunpack.c.l.s4 839922192
      %v1529 = vunpack.c.0.s8 %v1528
      %v1530 = vperm.slane %v1525, %v1529
      %1532 = vset.pattern.permute.xlu0 0
      %1533 = vperm.xlu0 %1532, %v1475
      %v1534 = vpop.permute.xlu0 %1533
      %v1537 = vunpack.c.l.s4 839922192
      %v1538 = vunpack.c.0.s8 %v1537
      %v1539 = vperm.slane %v1534, %v1538
      %1541 = vset.pattern.permute.xlu0 0
      %1542 = vperm.xlu0 %1541, %v1476
      %v1543 = vpop.permute.xlu0 %1542
      %v1546 = vunpack.c.l.s4 839922192
      %v1547 = vunpack.c.0.s8 %v1546
      %v1548 = vperm.slane %v1543, %v1547
      %1550 = vset.pattern.permute.xlu0 0
      %1551 = vperm.xlu0 %1550, %v1477
      %v1552 = vpop.permute.xlu0 %1551
      %v1555 = vunpack.c.l.s4 839922192
      %v1556 = vunpack.c.0.s8 %v1555
      %v1557 = vperm.slane %v1552, %v1556
      %1559 = vset.pattern.permute.xlu0 0
      %1560 = vperm.xlu0 %1559, %v1478
      %v1561 = vpop.permute.xlu0 %1560
      %v1564 = vunpack.c.l.s4 839922192
      %v1565 = vunpack.c.0.s8 %v1564
      %v1566 = vperm.slane %v1561, %v1565
      %1568 = vset.pattern.permute.xlu0 0
      %1569 = vperm.xlu0 %1568, %v1479
      %v1570 = vpop.permute.xlu0 %1569
      %v1573 = vunpack.c.l.s4 839922192
      %v1574 = vunpack.c.0.s8 %v1573
      %v1575 = vperm.slane %v1570, %v1574
      %1577 = vset.pattern.permute.xlu0 0
      %1578 = vperm.xlu0 %1577, %v1480
      %v1579 = vpop.permute.xlu0 %1578
      %v1582 = vunpack.c.l.s4 839922192
      %v1583 = vunpack.c.0.s8 %v1582
      %v1584 = vperm.slane %v1579, %v1583
      %1586 = vset.pattern.permute.xlu0 0
      %1587 = vperm.xlu0 %1586, %v1481
      %v1588 = vpop.permute.xlu0 %1587
      %v1591 = vunpack.c.l.s4 839922192
      %v1592 = vunpack.c.0.s8 %v1591
      %v1593 = vperm.slane %v1588, %v1592
      %1595 = vset.pattern.permute.xlu0 0
      %1596 = vperm.xlu0 %1595, %v1482
      %v1597 = vpop.permute.xlu0 %1596
      %v1600 = vunpack.c.l.s4 839922192
      %v1601 = vunpack.c.0.s8 %v1600
      %v1602 = vperm.slane %v1597, %v1601
      %1604 = vset.pattern.permute.xlu0 0
      %1605 = vperm.xlu0 %1604, %v1483
      %v1606 = vpop.permute.xlu0 %1605
      %v1609 = vunpack.c.l.s4 839922192
      %v1610 = vunpack.c.0.s8 %v1609
      %v1611 = vperm.slane %v1606, %v1610
      %1613 = vset.pattern.permute.xlu0 0
      %1614 = vperm.xlu0 %1613, %v1484
      %v1615 = vpop.permute.xlu0 %1614
      %v1618 = vunpack.c.l.s4 839922192
      %v1619 = vunpack.c.0.s8 %v1618
      %v1620 = vperm.slane %v1615, %v1619
      %1622 = vset.pattern.permute.xlu0 0
      %1623 = vperm.xlu0 %1622, %v1485
      %v1624 = vpop.permute.xlu0 %1623
      %v1627 = vunpack.c.l.s4 839922192
      %v1628 = vunpack.c.0.s8 %v1627
      %v1629 = vperm.slane %v1624, %v1628
      %v1630 = vunpack.c.l.bf16 %v1454
      %v1631 = vunpack.c.h.bf16 %v1454
      %v1632 = vunpack.c.l.bf16 %v1455
      %v1633 = vunpack.c.h.bf16 %v1455
      %v1634 = vunpack.c.l.bf16 %v1456
      %v1635 = vunpack.c.h.bf16 %v1456
      %v1636 = vunpack.c.l.bf16 %v1457
      %v1637 = vunpack.c.h.bf16 %v1457
      %v1638 = vunpack.c.l.bf16 %v1458
      %v1639 = vunpack.c.h.bf16 %v1458
      %v1640 = vunpack.c.l.bf16 %v1459
      %v1641 = vunpack.c.h.bf16 %v1459
      %v1642 = vunpack.c.l.bf16 %v1460
      %v1643 = vunpack.c.h.bf16 %v1460
      %v1644 = vunpack.c.l.bf16 %v1461
      %v1645 = vunpack.c.h.bf16 %v1461
      %v1646 = vunpack.c.l.bf16 %v1462
      %v1647 = vunpack.c.h.bf16 %v1462
      %v1648 = vunpack.c.l.bf16 %v1463
      %v1649 = vunpack.c.h.bf16 %v1463
      %v1650 = vunpack.c.l.bf16 %v1464
      %v1651 = vunpack.c.h.bf16 %v1464
      %v1652 = vunpack.c.l.bf16 %v1465
      %v1653 = vunpack.c.h.bf16 %v1465
      %v1654 = vunpack.c.l.bf16 %v1466
      %v1655 = vunpack.c.h.bf16 %v1466
      %v1656 = vunpack.c.l.bf16 %v1467
      %v1657 = vunpack.c.h.bf16 %v1467
      %v1658 = vunpack.c.l.bf16 %v1468
      %v1659 = vunpack.c.h.bf16 %v1468
      %v1660 = vunpack.c.l.bf16 %v1469
      %v1661 = vunpack.c.h.bf16 %v1469
      %v1662 = vunpack.c.l.bf16 %v1494
      %v1663 = vunpack.c.l.bf16 %v1503
      %v1664 = vunpack.c.l.bf16 %v1512
      %v1665 = vunpack.c.l.bf16 %v1521
      %v1666 = vunpack.c.l.bf16 %v1530
      %v1667 = vunpack.c.l.bf16 %v1539
      %v1668 = vunpack.c.l.bf16 %v1548
      %v1669 = vunpack.c.l.bf16 %v1557
      %v1670 = vunpack.c.l.bf16 %v1566
      %v1671 = vunpack.c.l.bf16 %v1575
      %v1672 = vunpack.c.l.bf16 %v1584
      %v1673 = vunpack.c.l.bf16 %v1593
      %v1674 = vunpack.c.l.bf16 %v1602
      %v1675 = vunpack.c.l.bf16 %v1611
      %v1676 = vunpack.c.l.bf16 %v1620
      %v1677 = vunpack.c.l.bf16 %v1629
      %v1678 = vadd.f32 %v1630, %v1662
      %v1679 = vadd.f32 %v1631, %v1662
      %v1680 = vadd.f32 %v1632, %v1663
      %v1681 = vadd.f32 %v1633, %v1663
      %v1682 = vadd.f32 %v1634, %v1664
      %v1683 = vadd.f32 %v1635, %v1664
      %v1684 = vadd.f32 %v1636, %v1665
      %v1685 = vadd.f32 %v1637, %v1665
      %v1686 = vadd.f32 %v1638, %v1666
      %v1687 = vadd.f32 %v1639, %v1666
      %v1688 = vadd.f32 %v1640, %v1667
      %v1689 = vadd.f32 %v1641, %v1667
      %v1690 = vadd.f32 %v1642, %v1668
      %v1691 = vadd.f32 %v1643, %v1668
      %v1692 = vadd.f32 %v1644, %v1669
      %v1693 = vadd.f32 %v1645, %v1669
      %v1694 = vadd.f32 %v1646, %v1670
      %v1695 = vadd.f32 %v1647, %v1670
      %v1696 = vadd.f32 %v1648, %v1671
      %v1697 = vadd.f32 %v1649, %v1671
      %v1698 = vadd.f32 %v1650, %v1672
      %v1699 = vadd.f32 %v1651, %v1672
      %v1700 = vadd.f32 %v1652, %v1673
      %v1701 = vadd.f32 %v1653, %v1673
      %v1702 = vadd.f32 %v1654, %v1674
      %v1703 = vadd.f32 %v1655, %v1674
      %v1704 = vadd.f32 %v1656, %v1675
      %v1705 = vadd.f32 %v1657, %v1675
      %v1706 = vadd.f32 %v1658, %v1676
      %v1707 = vadd.f32 %v1659, %v1676
      %v1708 = vadd.f32 %v1660, %v1677
      %v1709 = vadd.f32 %v1661, %v1677
      %v1710 = vpack.c.bf16 %v1679, %v1678
      %v1711 = vpack.c.bf16 %v1681, %v1680
      %v1712 = vpack.c.bf16 %v1683, %v1682
      %v1713 = vpack.c.bf16 %v1685, %v1684
      %v1714 = vpack.c.bf16 %v1687, %v1686
      %v1715 = vpack.c.bf16 %v1689, %v1688
      %v1716 = vpack.c.bf16 %v1691, %v1690
      %v1717 = vpack.c.bf16 %v1693, %v1692
      %v1718 = vpack.c.bf16 %v1695, %v1694
      %v1719 = vpack.c.bf16 %v1697, %v1696
      %v1720 = vpack.c.bf16 %v1699, %v1698
      %v1721 = vpack.c.bf16 %v1701, %v1700
      %v1722 = vpack.c.bf16 %v1703, %v1702
      %v1723 = vpack.c.bf16 %v1705, %v1704
      %v1724 = vpack.c.bf16 %v1707, %v1706
      %v1725 = vpack.c.bf16 %v1709, %v1708
      %v1726 = vunpack.c.l.bf16 %v1710
      %v1727 = vunpack.c.h.bf16 %v1710
      %v1728 = vunpack.c.l.bf16 %v1711
      %v1729 = vunpack.c.h.bf16 %v1711
      %v1730 = vunpack.c.l.bf16 %v1712
      %v1731 = vunpack.c.h.bf16 %v1712
      %v1732 = vunpack.c.l.bf16 %v1713
      %v1733 = vunpack.c.h.bf16 %v1713
      %v1734 = vunpack.c.l.bf16 %v1714
      %v1735 = vunpack.c.h.bf16 %v1714
      %v1736 = vunpack.c.l.bf16 %v1715
      %v1737 = vunpack.c.h.bf16 %v1715
      %v1738 = vunpack.c.l.bf16 %v1716
      %v1739 = vunpack.c.h.bf16 %v1716
      %v1740 = vunpack.c.l.bf16 %v1717
      %v1741 = vunpack.c.h.bf16 %v1717
      %v1742 = vunpack.c.l.bf16 %v1718
      %v1743 = vunpack.c.h.bf16 %v1718
      %v1744 = vunpack.c.l.bf16 %v1719
      %v1745 = vunpack.c.h.bf16 %v1719
      %v1746 = vunpack.c.l.bf16 %v1720
      %v1747 = vunpack.c.h.bf16 %v1720
      %v1748 = vunpack.c.l.bf16 %v1721
      %v1749 = vunpack.c.h.bf16 %v1721
      %v1750 = vunpack.c.l.bf16 %v1722
      %v1751 = vunpack.c.h.bf16 %v1722
      %v1752 = vunpack.c.l.bf16 %v1723
      %v1753 = vunpack.c.h.bf16 %v1723
      %v1754 = vunpack.c.l.bf16 %v1724
      %v1755 = vunpack.c.h.bf16 %v1724
      %v1756 = vunpack.c.l.bf16 %v1725
      %v1757 = vunpack.c.h.bf16 %v1725
      %v1758 = vmax.f32 %v1726, 0.0
      %v1759 = vmax.f32 %v1727, 0.0
      %v1760 = vmax.f32 %v1728, 0.0
      %v1761 = vmax.f32 %v1729, 0.0
      %v1762 = vmax.f32 %v1730, 0.0
      %v1763 = vmax.f32 %v1731, 0.0
      %v1764 = vmax.f32 %v1732, 0.0
      %v1765 = vmax.f32 %v1733, 0.0
      %v1766 = vmax.f32 %v1734, 0.0
      %v1767 = vmax.f32 %v1735, 0.0
      %v1768 = vmax.f32 %v1736, 0.0
      %v1769 = vmax.f32 %v1737, 0.0
      %v1770 = vmax.f32 %v1738, 0.0
      %v1771 = vmax.f32 %v1739, 0.0
      %v1772 = vmax.f32 %v1740, 0.0
      %v1773 = vmax.f32 %v1741, 0.0
      %v1774 = vmax.f32 %v1742, 0.0
      %v1775 = vmax.f32 %v1743, 0.0
      %v1776 = vmax.f32 %v1744, 0.0
      %v1777 = vmax.f32 %v1745, 0.0
      %v1778 = vmax.f32 %v1746, 0.0
      %v1779 = vmax.f32 %v1747, 0.0
      %v1780 = vmax.f32 %v1748, 0.0
      %v1781 = vmax.f32 %v1749, 0.0
      %v1782 = vmax.f32 %v1750, 0.0
      %v1783 = vmax.f32 %v1751, 0.0
      %v1784 = vmax.f32 %v1752, 0.0
      %v1785 = vmax.f32 %v1753, 0.0
      %v1786 = vmax.f32 %v1754, 0.0
      %v1787 = vmax.f32 %v1755, 0.0
      %v1788 = vmax.f32 %v1756, 0.0
      %v1789 = vmax.f32 %v1757, 0.0
      %v1790 = vpack.c.bf16 %v1760, %v1758
      %v1791 = vpack.c.bf16 %v1761, %v1759
      %v1792 = vpack.c.bf16 %v1764, %v1762
      %v1793 = vpack.c.bf16 %v1765, %v1763
      %v1794 = vpack.c.bf16 %v1768, %v1766
      %v1795 = vpack.c.bf16 %v1769, %v1767
      %v1796 = vpack.c.bf16 %v1772, %v1770
      %v1797 = vpack.c.bf16 %v1773, %v1771
      %v1798 = vpack.c.bf16 %v1776, %v1774
      %v1799 = vpack.c.bf16 %v1777, %v1775
      %v1800 = vpack.c.bf16 %v1780, %v1778
      %v1801 = vpack.c.bf16 %v1781, %v1779
      %v1802 = vpack.c.bf16 %v1784, %v1782
      %v1803 = vpack.c.bf16 %v1785, %v1783
      %v1804 = vpack.c.bf16 %v1788, %v1786
      %v1805 = vpack.c.bf16 %v1789, %v1787
      %v1806 = vld [vmem:[%s9] sm:$0xf]
      %v1807 = vld [vmem:[%s9 + $0x4] sm:$0xf]
      %v1808 = vld [vmem:[%s9 + $0x8] sm:$0xf]
      %v1809 = vld [vmem:[%s9 + $0xc] sm:$0xf]
      %v1810 = vld [vmem:[%s9 + $0x10] sm:$0xf]
      %v1811 = vld [vmem:[%s9 + $0x14] sm:$0xf]
      %v1812 = vld [vmem:[%s9 + $0x18] sm:$0xf]
      %v1813 = vld [vmem:[%s9 + $0x1c] sm:$0xf]
      %v1814 = vld [vmem:[%s9 + $0x20] sm:$0xf]
      %v1815 = vld [vmem:[%s9 + $0x24] sm:$0xf]
      %v1816 = vld [vmem:[%s9 + $0x28] sm:$0xf]
      %v1817 = vld [vmem:[%s9 + $0x2c] sm:$0xf]
      %v1818 = vld [vmem:[%s9 + $0x30] sm:$0xf]
      %v1819 = vld [vmem:[%s9 + $0x34] sm:$0xf]
      %v1820 = vld [vmem:[%s9 + $0x38] sm:$0xf]
      %v1821 = vld [vmem:[%s9 + $0x3c] sm:$0xf]
      %v1822 = vld [vmem:[%s10] sm:$0xf]
      %v1823 = vld [vmem:[%s10 + $0x4] sm:$0xf]
      %v1824 = vld [vmem:[%s10 + $0x8] sm:$0xf]
      %v1825 = vld [vmem:[%s10 + $0xc] sm:$0xf]
      %v1826 = vld [vmem:[%s10 + $0x10] sm:$0xf]
      %v1827 = vld [vmem:[%s10 + $0x14] sm:$0xf]
      %v1828 = vld [vmem:[%s10 + $0x18] sm:$0xf]
      %v1829 = vld [vmem:[%s10 + $0x1c] sm:$0xf]
      %v1830 = vld [vmem:[%s10 + $0x20] sm:$0xf]
      %v1831 = vld [vmem:[%s10 + $0x24] sm:$0xf]
      %v1832 = vld [vmem:[%s10 + $0x28] sm:$0xf]
      %v1833 = vld [vmem:[%s10 + $0x2c] sm:$0xf]
      %v1834 = vld [vmem:[%s10 + $0x30] sm:$0xf]
      %v1835 = vld [vmem:[%s10 + $0x34] sm:$0xf]
      %v1836 = vld [vmem:[%s10 + $0x38] sm:$0xf]
      %v1837 = vld [vmem:[%s10 + $0x3c] sm:$0xf]
      %v1854 = vunpack.c.l.b16 %v1806
      %v1855 = vunpack.c.l.b16 %v1807
      %v1856 = vunpack.c.l.b16 %v1808
      %v1857 = vunpack.c.l.b16 %v1809
      %v1858 = vunpack.c.l.b16 %v1810
      %v1859 = vunpack.c.l.b16 %v1811
      %v1860 = vunpack.c.l.b16 %v1812
      %v1861 = vunpack.c.l.b16 %v1813
      %v1862 = vunpack.c.l.b16 %v1814
      %v1863 = vunpack.c.l.b16 %v1815
      %v1864 = vunpack.c.l.b16 %v1816
      %v1865 = vunpack.c.l.b16 %v1817
      %v1866 = vunpack.c.l.b16 %v1818
      %v1867 = vunpack.c.l.b16 %v1819
      %v1868 = vunpack.c.l.b16 %v1820
      %v1869 = vunpack.c.l.b16 %v1821
      %v1870 = vpack.c.b16 %v1855, %v1854
      %v1871 = vpack.c.b16 %v1857, %v1856
      %v1872 = vpack.c.b16 %v1859, %v1858
      %v1873 = vpack.c.b16 %v1861, %v1860
      %v1874 = vpack.c.b16 %v1863, %v1862
      %v1875 = vpack.c.b16 %v1865, %v1864
      %v1876 = vpack.c.b16 %v1867, %v1866
      %v1877 = vpack.c.b16 %v1869, %v1868
      %1886 = vmatpush.bf16.msra.mxu0 %v1804
      %1887 = vmatpush.bf16.msra.mxu0 %v1802
      %1888 = vmatpush.bf16.msra.mxu0 %v1800
      %1889 = vmatpush.bf16.msra.mxu0 %v1798
      %1890 = vmatpush.bf16.msra.mxu0 %v1796
      %1891 = vmatpush.bf16.msra.mxu0 %v1794
      %1892 = vmatpush.bf16.msra.mxu0 %v1792
      %1893 = vmatpush.bf16.msra.mxu0 %v1790
      %1894 = vmatmul.bf16.gmra.mxu0 %v1870
      %v1895 = vpop.f32.mrf.mxu0
      %v1896 = vadd.f32 0.0, %v1895
      %v1897 = vpop.f32.mrf.mxu0
      %v1898 = vadd.f32 0.0, %v1897
      %1899 = vmatmul.bf16.gmra.mxu0 %v1871
      %v1900 = vpop.f32.mrf.mxu0
      %v1901 = vadd.f32 0.0, %v1900
      %v1902 = vpop.f32.mrf.mxu0
      %v1903 = vadd.f32 0.0, %v1902
      %1904 = vmatmul.bf16.gmra.mxu0 %v1872
      %v1905 = vpop.f32.mrf.mxu0
      %v1906 = vadd.f32 0.0, %v1905
      %v1907 = vpop.f32.mrf.mxu0
      %v1908 = vadd.f32 0.0, %v1907
      %1909 = vmatmul.bf16.gmra.mxu0 %v1873
      %v1910 = vpop.f32.mrf.mxu0
      %v1911 = vadd.f32 0.0, %v1910
      %v1912 = vpop.f32.mrf.mxu0
      %v1913 = vadd.f32 0.0, %v1912
      %1914 = vmatmul.bf16.gmra.mxu0 %v1874
      %v1915 = vpop.f32.mrf.mxu0
      %v1916 = vadd.f32 0.0, %v1915
      %v1917 = vpop.f32.mrf.mxu0
      %v1918 = vadd.f32 0.0, %v1917
      %1919 = vmatmul.bf16.gmra.mxu0 %v1875
      %v1920 = vpop.f32.mrf.mxu0
      %v1921 = vadd.f32 0.0, %v1920
      %v1922 = vpop.f32.mrf.mxu0
      %v1923 = vadd.f32 0.0, %v1922
      %1924 = vmatmul.bf16.gmra.mxu0 %v1876
      %v1925 = vpop.f32.mrf.mxu0
      %v1926 = vadd.f32 0.0, %v1925
      %v1927 = vpop.f32.mrf.mxu0
      %v1928 = vadd.f32 0.0, %v1927
      %1929 = vmatmul.bf16.gmra.mxu0 %v1877
      %v1930 = vpop.f32.mrf.mxu0
      %v1931 = vadd.f32 0.0, %v1930
      %v1932 = vpop.f32.mrf.mxu0
      %v1933 = vadd.f32 0.0, %v1932
      %1934 = vdwg.mxu0
      %1935 = vmatpush.bf16.msra.mxu0 %v1805
      %1936 = vmatpush.bf16.msra.mxu0 %v1803
      %1937 = vmatpush.bf16.msra.mxu0 %v1801
      %1938 = vmatpush.bf16.msra.mxu0 %v1799
      %1939 = vmatpush.bf16.msra.mxu0 %v1797
      %1940 = vmatpush.bf16.msra.mxu0 %v1795
      %1941 = vmatpush.bf16.msra.mxu0 %v1793
      %1942 = vmatpush.bf16.msra.mxu0 %v1791
      %1943 = vmatmul.bf16.gmra.mxu0 %v1870
      %v1944 = vpop.f32.mrf.mxu0
      %v1945 = vadd.f32 0.0, %v1944
      %v1946 = vpop.f32.mrf.mxu0
      %v1947 = vadd.f32 0.0, %v1946
      %1948 = vmatmul.bf16.gmra.mxu0 %v1871
      %v1949 = vpop.f32.mrf.mxu0
      %v1950 = vadd.f32 0.0, %v1949
      %v1951 = vpop.f32.mrf.mxu0
      %v1952 = vadd.f32 0.0, %v1951
      %1953 = vmatmul.bf16.gmra.mxu0 %v1872
      %v1954 = vpop.f32.mrf.mxu0
      %v1955 = vadd.f32 0.0, %v1954
      %v1956 = vpop.f32.mrf.mxu0
      %v1957 = vadd.f32 0.0, %v1956
      %1958 = vmatmul.bf16.gmra.mxu0 %v1873
      %v1959 = vpop.f32.mrf.mxu0
      %v1960 = vadd.f32 0.0, %v1959
      %v1961 = vpop.f32.mrf.mxu0
      %v1962 = vadd.f32 0.0, %v1961
      %1963 = vmatmul.bf16.gmra.mxu0 %v1874
      %v1964 = vpop.f32.mrf.mxu0
      %v1965 = vadd.f32 0.0, %v1964
      %v1966 = vpop.f32.mrf.mxu0
      %v1967 = vadd.f32 0.0, %v1966
      %1968 = vmatmul.bf16.gmra.mxu0 %v1875
      %v1969 = vpop.f32.mrf.mxu0
      %v1970 = vadd.f32 0.0, %v1969
      %v1971 = vpop.f32.mrf.mxu0
      %v1972 = vadd.f32 0.0, %v1971
      %1973 = vmatmul.bf16.gmra.mxu0 %v1876
      %v1974 = vpop.f32.mrf.mxu0
      %v1975 = vadd.f32 0.0, %v1974
      %v1976 = vpop.f32.mrf.mxu0
      %v1977 = vadd.f32 0.0, %v1976
      %1978 = vmatmul.bf16.gmra.mxu0 %v1877
      %v1979 = vpop.f32.mrf.mxu0
      %v1980 = vadd.f32 0.0, %v1979
      %v1981 = vpop.f32.mrf.mxu0
      %v1982 = vadd.f32 0.0, %v1981
      %1983 = vdwg.mxu0
      %v1984 = vpack.c.bf16 %v1945, %v1896
      %v1985 = vpack.c.bf16 %v1947, %v1898
      %v1986 = vpack.c.bf16 %v1950, %v1901
      %v1987 = vpack.c.bf16 %v1952, %v1903
      %v1988 = vpack.c.bf16 %v1955, %v1906
      %v1989 = vpack.c.bf16 %v1957, %v1908
      %v1990 = vpack.c.bf16 %v1960, %v1911
      %v1991 = vpack.c.bf16 %v1962, %v1913
      %v1992 = vpack.c.bf16 %v1965, %v1916
      %v1993 = vpack.c.bf16 %v1967, %v1918
      %v1994 = vpack.c.bf16 %v1970, %v1921
      %v1995 = vpack.c.bf16 %v1972, %v1923
      %v1996 = vpack.c.bf16 %v1975, %v1926
      %v1997 = vpack.c.bf16 %v1977, %v1928
      %v1998 = vpack.c.bf16 %v1980, %v1931
      %v1999 = vpack.c.bf16 %v1982, %v1933
      %2001 = vset.pattern.permute.xlu0 0
      %2002 = vperm.xlu0 %2001, %v1822
      %v2003 = vpop.permute.xlu0 %2002
      %v2006 = vunpack.c.l.s4 839922192
      %v2007 = vunpack.c.0.s8 %v2006
      %v2008 = vperm.slane %v2003, %v2007
      %2010 = vset.pattern.permute.xlu0 0
      %2011 = vperm.xlu0 %2010, %v1823
      %v2012 = vpop.permute.xlu0 %2011
      %v2015 = vunpack.c.l.s4 839922192
      %v2016 = vunpack.c.0.s8 %v2015
      %v2017 = vperm.slane %v2012, %v2016
      %2019 = vset.pattern.permute.xlu0 0
      %2020 = vperm.xlu0 %2019, %v1824
      %v2021 = vpop.permute.xlu0 %2020
      %v2024 = vunpack.c.l.s4 839922192
      %v2025 = vunpack.c.0.s8 %v2024
      %v2026 = vperm.slane %v2021, %v2025
      %2028 = vset.pattern.permute.xlu0 0
      %2029 = vperm.xlu0 %2028, %v1825
      %v2030 = vpop.permute.xlu0 %2029
      %v2033 = vunpack.c.l.s4 839922192
      %v2034 = vunpack.c.0.s8 %v2033
      %v2035 = vperm.slane %v2030, %v2034
      %2037 = vset.pattern.permute.xlu0 0
      %2038 = vperm.xlu0 %2037, %v1826
      %v2039 = vpop.permute.xlu0 %2038
      %v2042 = vunpack.c.l.s4 839922192
      %v2043 = vunpack.c.0.s8 %v2042
      %v2044 = vperm.slane %v2039, %v2043
      %2046 = vset.pattern.permute.xlu0 0
      %2047 = vperm.xlu0 %2046, %v1827
      %v2048 = vpop.permute.xlu0 %2047
      %v2051 = vunpack.c.l.s4 839922192
      %v2052 = vunpack.c.0.s8 %v2051
      %v2053 = vperm.slane %v2048, %v2052
      %2055 = vset.pattern.permute.xlu0 0
      %2056 = vperm.xlu0 %2055, %v1828
      %v2057 = vpop.permute.xlu0 %2056
      %v2060 = vunpack.c.l.s4 839922192
      %v2061 = vunpack.c.0.s8 %v2060
      %v2062 = vperm.slane %v2057, %v2061
      %2064 = vset.pattern.permute.xlu0 0
      %2065 = vperm.xlu0 %2064, %v1829
      %v2066 = vpop.permute.xlu0 %2065
      %v2069 = vunpack.c.l.s4 839922192
      %v2070 = vunpack.c.0.s8 %v2069
      %v2071 = vperm.slane %v2066, %v2070
      %2073 = vset.pattern.permute.xlu0 0
      %2074 = vperm.xlu0 %2073, %v1830
      %v2075 = vpop.permute.xlu0 %2074
      %v2078 = vunpack.c.l.s4 839922192
      %v2079 = vunpack.c.0.s8 %v2078
      %v2080 = vperm.slane %v2075, %v2079
      %2082 = vset.pattern.permute.xlu0 0
      %2083 = vperm.xlu0 %2082, %v1831
      %v2084 = vpop.permute.xlu0 %2083
      %v2087 = vunpack.c.l.s4 839922192
      %v2088 = vunpack.c.0.s8 %v2087
      %v2089 = vperm.slane %v2084, %v2088
      %2091 = vset.pattern.permute.xlu0 0
      %2092 = vperm.xlu0 %2091, %v1832
      %v2093 = vpop.permute.xlu0 %2092
      %v2096 = vunpack.c.l.s4 839922192
      %v2097 = vunpack.c.0.s8 %v2096
      %v2098 = vperm.slane %v2093, %v2097
      %2100 = vset.pattern.permute.xlu0 0
      %2101 = vperm.xlu0 %2100, %v1833
      %v2102 = vpop.permute.xlu0 %2101
      %v2105 = vunpack.c.l.s4 839922192
      %v2106 = vunpack.c.0.s8 %v2105
      %v2107 = vperm.slane %v2102, %v2106
      %2109 = vset.pattern.permute.xlu0 0
      %2110 = vperm.xlu0 %2109, %v1834
      %v2111 = vpop.permute.xlu0 %2110
      %v2114 = vunpack.c.l.s4 839922192
      %v2115 = vunpack.c.0.s8 %v2114
      %v2116 = vperm.slane %v2111, %v2115
      %2118 = vset.pattern.permute.xlu0 0
      %2119 = vperm.xlu0 %2118, %v1835
      %v2120 = vpop.permute.xlu0 %2119
      %v2123 = vunpack.c.l.s4 839922192
      %v2124 = vunpack.c.0.s8 %v2123
      %v2125 = vperm.slane %v2120, %v2124
      %2127 = vset.pattern.permute.xlu0 0
      %2128 = vperm.xlu0 %2127, %v1836
      %v2129 = vpop.permute.xlu0 %2128
      %v2132 = vunpack.c.l.s4 839922192
      %v2133 = vunpack.c.0.s8 %v2132
      %v2134 = vperm.slane %v2129, %v2133
      %2136 = vset.pattern.permute.xlu0 0
      %2137 = vperm.xlu0 %2136, %v1837
      %v2138 = vpop.permute.xlu0 %2137
      %v2141 = vunpack.c.l.s4 839922192
      %v2142 = vunpack.c.0.s8 %v2141
      %v2143 = vperm.slane %v2138, %v2142
      %v2144 = vunpack.c.l.bf16 %v1984
      %v2145 = vunpack.c.h.bf16 %v1984
      %v2146 = vunpack.c.l.bf16 %v1985
      %v2147 = vunpack.c.h.bf16 %v1985
      %v2148 = vunpack.c.l.bf16 %v1986
      %v2149 = vunpack.c.h.bf16 %v1986
      %v2150 = vunpack.c.l.bf16 %v1987
      %v2151 = vunpack.c.h.bf16 %v1987
      %v2152 = vunpack.c.l.bf16 %v1988
      %v2153 = vunpack.c.h.bf16 %v1988
      %v2154 = vunpack.c.l.bf16 %v1989
      %v2155 = vunpack.c.h.bf16 %v1989
      %v2156 = vunpack.c.l.bf16 %v1990
      %v2157 = vunpack.c.h.bf16 %v1990
      %v2158 = vunpack.c.l.bf16 %v1991
      %v2159 = vunpack.c.h.bf16 %v1991
      %v2160 = vunpack.c.l.bf16 %v1992
      %v2161 = vunpack.c.h.bf16 %v1992
      %v2162 = vunpack.c.l.bf16 %v1993
      %v2163 = vunpack.c.h.bf16 %v1993
      %v2164 = vunpack.c.l.bf16 %v1994
      %v2165 = vunpack.c.h.bf16 %v1994
      %v2166 = vunpack.c.l.bf16 %v1995
      %v2167 = vunpack.c.h.bf16 %v1995
      %v2168 = vunpack.c.l.bf16 %v1996
      %v2169 = vunpack.c.h.bf16 %v1996
      %v2170 = vunpack.c.l.bf16 %v1997
      %v2171 = vunpack.c.h.bf16 %v1997
      %v2172 = vunpack.c.l.bf16 %v1998
      %v2173 = vunpack.c.h.bf16 %v1998
      %v2174 = vunpack.c.l.bf16 %v1999
      %v2175 = vunpack.c.h.bf16 %v1999
      %v2176 = vunpack.c.l.bf16 %v2008
      %v2177 = vunpack.c.l.bf16 %v2017
      %v2178 = vunpack.c.l.bf16 %v2026
      %v2179 = vunpack.c.l.bf16 %v2035
      %v2180 = vunpack.c.l.bf16 %v2044
      %v2181 = vunpack.c.l.bf16 %v2053
      %v2182 = vunpack.c.l.bf16 %v2062
      %v2183 = vunpack.c.l.bf16 %v2071
      %v2184 = vunpack.c.l.bf16 %v2080
      %v2185 = vunpack.c.l.bf16 %v2089
      %v2186 = vunpack.c.l.bf16 %v2098
      %v2187 = vunpack.c.l.bf16 %v2107
      %v2188 = vunpack.c.l.bf16 %v2116
      %v2189 = vunpack.c.l.bf16 %v2125
      %v2190 = vunpack.c.l.bf16 %v2134
      %v2191 = vunpack.c.l.bf16 %v2143
      %v2192 = vadd.f32 %v2144, %v2176
      %v2193 = vadd.f32 %v2145, %v2176
      %v2194 = vadd.f32 %v2146, %v2177
      %v2195 = vadd.f32 %v2147, %v2177
      %v2196 = vadd.f32 %v2148, %v2178
      %v2197 = vadd.f32 %v2149, %v2178
      %v2198 = vadd.f32 %v2150, %v2179
      %v2199 = vadd.f32 %v2151, %v2179
      %v2200 = vadd.f32 %v2152, %v2180
      %v2201 = vadd.f32 %v2153, %v2180
      %v2202 = vadd.f32 %v2154, %v2181
      %v2203 = vadd.f32 %v2155, %v2181
      %v2204 = vadd.f32 %v2156, %v2182
      %v2205 = vadd.f32 %v2157, %v2182
      %v2206 = vadd.f32 %v2158, %v2183
      %v2207 = vadd.f32 %v2159, %v2183
      %v2208 = vadd.f32 %v2160, %v2184
      %v2209 = vadd.f32 %v2161, %v2184
      %v2210 = vadd.f32 %v2162, %v2185
      %v2211 = vadd.f32 %v2163, %v2185
      %v2212 = vadd.f32 %v2164, %v2186
      %v2213 = vadd.f32 %v2165, %v2186
      %v2214 = vadd.f32 %v2166, %v2187
      %v2215 = vadd.f32 %v2167, %v2187
      %v2216 = vadd.f32 %v2168, %v2188
      %v2217 = vadd.f32 %v2169, %v2188
      %v2218 = vadd.f32 %v2170, %v2189
      %v2219 = vadd.f32 %v2171, %v2189
      %v2220 = vadd.f32 %v2172, %v2190
      %v2221 = vadd.f32 %v2173, %v2190
      %v2222 = vadd.f32 %v2174, %v2191
      %v2223 = vadd.f32 %v2175, %v2191
      %v2224 = vpack.c.bf16 %v2193, %v2192
      %v2225 = vpack.c.bf16 %v2195, %v2194
      %v2226 = vpack.c.bf16 %v2197, %v2196
      %v2227 = vpack.c.bf16 %v2199, %v2198
      %v2228 = vpack.c.bf16 %v2201, %v2200
      %v2229 = vpack.c.bf16 %v2203, %v2202
      %v2230 = vpack.c.bf16 %v2205, %v2204
      %v2231 = vpack.c.bf16 %v2207, %v2206
      %v2232 = vpack.c.bf16 %v2209, %v2208
      %v2233 = vpack.c.bf16 %v2211, %v2210
      %v2234 = vpack.c.bf16 %v2213, %v2212
      %v2235 = vpack.c.bf16 %v2215, %v2214
      %v2236 = vpack.c.bf16 %v2217, %v2216
      %v2237 = vpack.c.bf16 %v2219, %v2218
      %v2238 = vpack.c.bf16 %v2221, %v2220
      %v2239 = vpack.c.bf16 %v2223, %v2222
      %v2240 = vunpack.c.l.bf16 %v2224
      %v2241 = vunpack.c.h.bf16 %v2224
      %v2242 = vunpack.c.l.bf16 %v2225
      %v2243 = vunpack.c.h.bf16 %v2225
      %v2244 = vunpack.c.l.bf16 %v2226
      %v2245 = vunpack.c.h.bf16 %v2226
      %v2246 = vunpack.c.l.bf16 %v2227
      %v2247 = vunpack.c.h.bf16 %v2227
      %v2248 = vunpack.c.l.bf16 %v2228
      %v2249 = vunpack.c.h.bf16 %v2228
      %v2250 = vunpack.c.l.bf16 %v2229
      %v2251 = vunpack.c.h.bf16 %v2229
      %v2252 = vunpack.c.l.bf16 %v2230
      %v2253 = vunpack.c.h.bf16 %v2230
      %v2254 = vunpack.c.l.bf16 %v2231
      %v2255 = vunpack.c.h.bf16 %v2231
      %v2256 = vunpack.c.l.bf16 %v2232
      %v2257 = vunpack.c.h.bf16 %v2232
      %v2258 = vunpack.c.l.bf16 %v2233
      %v2259 = vunpack.c.h.bf16 %v2233
      %v2260 = vunpack.c.l.bf16 %v2234
      %v2261 = vunpack.c.h.bf16 %v2234
      %v2262 = vunpack.c.l.bf16 %v2235
      %v2263 = vunpack.c.h.bf16 %v2235
      %v2264 = vunpack.c.l.bf16 %v2236
      %v2265 = vunpack.c.h.bf16 %v2236
      %v2266 = vunpack.c.l.bf16 %v2237
      %v2267 = vunpack.c.h.bf16 %v2237
      %v2268 = vunpack.c.l.bf16 %v2238
      %v2269 = vunpack.c.h.bf16 %v2238
      %v2270 = vunpack.c.l.bf16 %v2239
      %v2271 = vunpack.c.h.bf16 %v2239
      %v2272 = vmax.f32 %v2240, 0.0
      %v2273 = vmax.f32 %v2241, 0.0
      %v2274 = vmax.f32 %v2242, 0.0
      %v2275 = vmax.f32 %v2243, 0.0
      %v2276 = vmax.f32 %v2244, 0.0
      %v2277 = vmax.f32 %v2245, 0.0
      %v2278 = vmax.f32 %v2246, 0.0
      %v2279 = vmax.f32 %v2247, 0.0
      %v2280 = vmax.f32 %v2248, 0.0
      %v2281 = vmax.f32 %v2249, 0.0
      %v2282 = vmax.f32 %v2250, 0.0
      %v2283 = vmax.f32 %v2251, 0.0
      %v2284 = vmax.f32 %v2252, 0.0
      %v2285 = vmax.f32 %v2253, 0.0
      %v2286 = vmax.f32 %v2254, 0.0
      %v2287 = vmax.f32 %v2255, 0.0
      %v2288 = vmax.f32 %v2256, 0.0
      %v2289 = vmax.f32 %v2257, 0.0
      %v2290 = vmax.f32 %v2258, 0.0
      %v2291 = vmax.f32 %v2259, 0.0
      %v2292 = vmax.f32 %v2260, 0.0
      %v2293 = vmax.f32 %v2261, 0.0
      %v2294 = vmax.f32 %v2262, 0.0
      %v2295 = vmax.f32 %v2263, 0.0
      %v2296 = vmax.f32 %v2264, 0.0
      %v2297 = vmax.f32 %v2265, 0.0
      %v2298 = vmax.f32 %v2266, 0.0
      %v2299 = vmax.f32 %v2267, 0.0
      %v2300 = vmax.f32 %v2268, 0.0
      %v2301 = vmax.f32 %v2269, 0.0
      %v2302 = vmax.f32 %v2270, 0.0
      %v2303 = vmax.f32 %v2271, 0.0
      %v2304 = vpack.c.bf16 %v2273, %v2272
      %v2305 = vpack.c.bf16 %v2275, %v2274
      %v2306 = vpack.c.bf16 %v2277, %v2276
      %v2307 = vpack.c.bf16 %v2279, %v2278
      %v2308 = vpack.c.bf16 %v2281, %v2280
      %v2309 = vpack.c.bf16 %v2283, %v2282
      %v2310 = vpack.c.bf16 %v2285, %v2284
      %v2311 = vpack.c.bf16 %v2287, %v2286
      %v2312 = vpack.c.bf16 %v2289, %v2288
      %v2313 = vpack.c.bf16 %v2291, %v2290
      %v2314 = vpack.c.bf16 %v2293, %v2292
      %v2315 = vpack.c.bf16 %v2295, %v2294
      %v2316 = vpack.c.bf16 %v2297, %v2296
      %v2317 = vpack.c.bf16 %v2299, %v2298
      %v2318 = vpack.c.bf16 %v2301, %v2300
      %v2319 = vpack.c.bf16 %v2303, %v2302
      %2320 = vst [vmem:[%s424] sm:$0xff] %v2304
      %2321 = vst [vmem:[%s424 + $0x8] sm:$0xff] %v2305
      %2322 = vst [vmem:[%s424 + $0x10] sm:$0xff] %v2306
      %2323 = vst [vmem:[%s424 + $0x18] sm:$0xff] %v2307
      %2324 = vst [vmem:[%s424 + $0x20] sm:$0xff] %v2308
      %2325 = vst [vmem:[%s424 + $0x28] sm:$0xff] %v2309
      %2326 = vst [vmem:[%s424 + $0x30] sm:$0xff] %v2310
      %2327 = vst [vmem:[%s424 + $0x38] sm:$0xff] %v2311
      %2328 = vst [vmem:[%s424 + $0x40] sm:$0xff] %v2312
      %2329 = vst [vmem:[%s424 + $0x48] sm:$0xff] %v2313
      %2330 = vst [vmem:[%s424 + $0x50] sm:$0xff] %v2314
      %2331 = vst [vmem:[%s424 + $0x58] sm:$0xff] %v2315
      %2332 = vst [vmem:[%s424 + $0x60] sm:$0xff] %v2316
      %2333 = vst [vmem:[%s424 + $0x68] sm:$0xff] %v2317
      %2334 = vst [vmem:[%s424 + $0x70] sm:$0xff] %v2318
      %2335 = vst [vmem:[%s424 + $0x78] sm:$0xff] %v2319
      %s2336 = smul.u32 2, %s27
      %p2337 = scmp.lt.s32.totalorder %s26, 1
      %s2338 = scalar_select %p2337, %s26, 1
      %p2339 = scmp.lt.s32.totalorder %s2336, 1
      %s2340 = scalar_select %p2339, %s2336, 1
      %s2341 = smul.addr %s2338, 32
      %s2342 = sadd.s32 %s2340, %s2341
      %s2343 = smul.addr %s2342, 4
      %s2344 = scalar_lea.vmem %s11, %s2343
      // Predicated region
      $region65: #{tpu_custom_call.1} parent=63 // pred_check
        %p2345 = pneg %p292
      $region66: #{tpu_custom_call.1} parent=63 // pred_check_branch
        %2347 = sbr.rel (%p2345) target = $region68
      $region67: #{tpu_custom_call.1} parent=63 // pred_region
        %s2348 = smul.u32 2, %s27
      $region68: #{tpu_custom_call.1} parent=63 // pred_fallthru
        _
    $region64: #{tpu_custom_call.1} parent=5 // pred_fallthru
      _
    %p2349 = scmp.le.s32.totalorder 2, %s17
    // Predicated region
    $region69: #{tpu_custom_call.1} parent=5 // pred_check
      %p2350 = pneg %p2349
    $region70: #{tpu_custom_call.1} parent=5 // pred_check_branch
      %2352 = sbr.rel (%p2350) target = $region72
    $region71: #{tpu_custom_call.1} parent=5 // pred_region
      %s2353 = ssub.s32 %s17, 2
      // Predicated region
      $region73: #{tpu_custom_call.1} parent=71 // pred_check
        %p2354 = pneg %p298
      $region74: #{tpu_custom_call.1} parent=71 // pred_check_branch
        %2356 = sbr.rel (%p2354) target = $region76
      $region75: #{tpu_custom_call.1} parent=71 // pred_region
        %s2357 = smul.u32 2, %s29
        %p2358 = scmp.lt.s32.totalorder %s28, 1
        %s2359 = scalar_select %p2358, %s28, 1
        %p2360 = scmp.lt.s32.totalorder %s2357, 1
        %s2361 = scalar_select %p2360, %s2357, 1
        %s2362 = smul.addr %s2359, 32
        %s2363 = sadd.s32 %s2361, %s2362
        %s2364 = smul.addr %s2363, 4
        %s2365 = scalar_lea.vmem %s11, %s2364
      $region76: #{tpu_custom_call.1} parent=71 // pred_fallthru
        _
    $region72: #{tpu_custom_call.1} parent=5 // pred_fallthru
      _
  $region6: #{tpu_custom_call.1} parent=0 // loop_footer
    %s21 = sadd.s32 1, %s17
  $region7: #{tpu_custom_call.1} parent=0 // loop_footer_branch
    %16 = sbr.rel target = $region3
  $region8: #{tpu_custom_call.1} parent=0 // loop_exit
    _

</llo_original>
